<compile_context>
chip_gen: v7x
topology: tpu7x:2x2x1
jax: 0.10.0
libtpu: 0.0.40
codegen_flags: <defaults>
</compile_context>

<pallas_src>
import functools

import jax
import jax.numpy as jnp
from jax import lax
from jax.experimental import pallas as pl
from jax.experimental.pallas import tpu as pltpu


def _sigmoid(x):
    # One EUP transcendental (tanh) per gate instead of exp + divide.
    return 0.5 * jnp.tanh(0.5 * x) + 0.5


def _lstm_fused_kernel(x_ref, w_ih_hbm, w_hh_hbm, w_fc_hbm, bg_ref, bfc_ref,
                       out_ref,
                       w_ih_scr, w_hh_scr, w_fc_scr, gx_scr, hseq_scr,
                       h_scr, c_scr, dma_sems, *, unroll):
    """Grid = (batch_shard, time_chunk).  One call = `tc` timesteps."""
    tc, bs, fp = x_ref.shape
    hp = h_scr.shape[-1]
    cdt = w_hh_scr.dtype

    # First time-chunk of each batch shard: copy weights HBM->VMEM once
    # (single-buffered residency) and zero the recurrent state.
    @pl.when(pl.program_id(1) == 0)
    def _init():
        copies = (
            pltpu.make_async_copy(w_ih_hbm, w_ih_scr, dma_sems.at[0]),
            pltpu.make_async_copy(w_hh_hbm, w_hh_scr, dma_sems.at[1]),
            pltpu.make_async_copy(w_fc_hbm, w_fc_scr, dma_sems.at[2]),
        )
        for cp in copies:
            cp.start()
        h_scr[...] = jnp.zeros_like(h_scr)
        c_scr[...] = jnp.zeros_like(c_scr)
        for cp in copies:
            cp.wait()

    # ---- bulk input projection for the whole chunk (one MXU GEMM) ----------
    x_chunk = x_ref[...].astype(cdt).reshape(tc * bs, fp)
    gx = jnp.dot(x_chunk, w_ih_scr[...], preferred_element_type=jnp.float32)
    gx = gx + bg_ref[...]
    gx_scr[...] = gx.reshape(tc, bs, 4 * hp)

    # ---- serial recurrence: only h @ W_hh^T + gate math per timestep -------
    w_hh = w_hh_scr[...]                       # hoisted weight load

    def step(s, carry):
        h_prev, c_prev = carry                 # f32 loop carries
        gates = gx_scr[s] + jnp.dot(h_prev.astype(cdt), w_hh,
                                    preferred_element_type=jnp.float32)
        i_g = _sigmoid(gates[:, 0 * hp:1 * hp])
        f_g = _sigmoid(gates[:, 1 * hp:2 * hp])
        g_g = jnp.tanh(gates[:, 2 * hp:3 * hp])
        o_g = _sigmoid(gates[:, 3 * hp:4 * hp])
        c_new = f_g * c_prev + i_g * g_g       # cell state kept in f32
        h_new = o_g * jnp.tanh(c_new)
        hseq_scr[s] = h_new.astype(hseq_scr.dtype)
        return h_new, c_new

    h_fin, c_fin = lax.fori_loop(0, tc, step, (h_scr[...], c_scr[...]),
                                 unroll=unroll)
    h_scr[...] = h_fin                         # persist state once per chunk
    c_scr[...] = c_fin

    # ---- fused time-distributed FC for the whole chunk (one MXU GEMM) ------
    h_all = hseq_scr[...].reshape(tc * bs, hp)
    y = jnp.dot(h_all, w_fc_scr[...], preferred_element_type=jnp.float32)
    y = y + bfc_ref[...]
    out_ref[...] = y.reshape(tc, bs, fp).astype(out_ref.dtype)


def _round_up(v, m):
    return ((v + m - 1) // m) * m


def _vmem_budget_bytes():
    """Per-generation VMEM budget with headroom (not a blanket 64 MiB)."""
    try:
        cap = int(pltpu.get_tpu_info().vmem_capacity_bytes)
    except Exception:
        cap = 64 * 1024 * 1024                 # conservative (v7x per-TC)
    return max(32 * 1024 * 1024, min(cap - 16 * 1024 * 1024, 100 * 1024 * 1024))


def _pad_gates(w, hp, kp):
    """(4H, K) gate-stacked weight -> (kp, 4*hp) transposed, per-gate padded."""
    four_h, k = w.shape
    h = four_h // 4
    w4 = w.reshape(4, h, k)
    w4 = jnp.pad(w4, ((0, 0), (0, hp - h), (0, kp - k)))
    return jnp.transpose(w4, (2, 0, 1)).reshape(kp, 4 * hp)


def lstm_forward(x, params, *, diff=False, time_chunk=None, batch_shards=None,
                 matmul_dtype=jnp.float32):
    """x: (T, B, F) float32 (time-major).  Returns (T, B, F)."""
    T, B, F = x.shape
    w_ih, w_hh, b_ih, b_hh, w_fc, b_fc = params
    H = w_hh.shape[1]
    cdt = jnp.dtype(matmul_dtype)
    cdtb = cdt.itemsize

    # Lane-align hidden and feature dims (lane-dense gate slices / output).
    Hp = _round_up(H, 128)
    Fp = _round_up(F, 128)

    # Batch sharding across TensorCores (v7x has 2 TCs); fall back to 1.
    if batch_shards is None:
        n_cores = getattr(jax.devices()[0], "num_cores", 1) or 1
        batch_shards = 2 if (B > 8 and n_cores >= 2) else 1
    n_bs = max(1, int(batch_shards))
    Bp = _round_up(max(B, 1), 8 * n_bs)
    Bs = Bp // n_bs

    # Time-chunk sizing from the VMEM budget (amortizes grid-step overhead).
    budget = _vmem_budget_bytes()
    if time_chunk is not None:
        tc = int(time_chunk)
    else:
        fixed = (cdtb * (Fp * 4 * Hp + Hp * 4 * Hp + Hp * Fp)   # resident weights
                 + 4 * 2 * Bs * Hp                              # h / c state
                 + 2 * 4 * (4 * Hp + Fp)                        # biases
                 + (4 << 20))                                   # headroom
        per_tc = Bs * (16 * Fp        # x + out blocks, double-buffered f32
                       + 16 * Hp      # gate pre-activation scratch (f32)
                       + cdtb * Hp)   # hidden-sequence scratch
        tc = int(max(1, (budget - fixed) // per_tc))
    tc = max(1, min(tc, 256, T))
    if tc > 8:
        tc = (tc // 8) * 8            # keep the inner unroll factor clean
    unroll = 8 if (tc > 8 and tc % 8 == 0) else True
    Tp = _round_up(T, tc)

    # ---- parameter packing (pad + transpose once, wrapper side) ------------
    w_ih_t = _pad_gates(w_ih, Hp, Fp).astype(cdt)                     # (Fp, 4Hp)
    w_hh_t = _pad_gates(w_hh, Hp, Hp).astype(cdt)                     # (Hp, 4Hp)
    w_fc_t = jnp.pad(w_fc, ((0, Fp - F), (0, Hp - H))).T.astype(cdt)  # (Hp, Fp)
    b_g = jnp.pad((b_ih + b_hh).reshape(4, H), ((0, 0), (0, Hp - H)))
    b_g = b_g.reshape(1, 4 * Hp).astype(jnp.float32)
    b_fc_p = jnp.pad(b_fc, (0, Fp - F)).reshape(1, Fp).astype(jnp.float32)

    x_p = jnp.pad(x.astype(jnp.float32),
                  ((0, Tp - T), (0, Bp - B), (0, Fp - F)))

    out_p = pl.pallas_call(
        functools.partial(_lstm_fused_kernel, unroll=unroll),
        out_shape=jax.ShapeDtypeStruct((Tp, Bp, Fp), jnp.float32),
        grid_spec=pltpu.PrefetchScalarGridSpec(
            num_scalar_prefetch=0,
            grid=(n_bs, Tp // tc),
            in_specs=[
                pl.BlockSpec((tc, Bs, Fp), lambda p, c: (c, p, 0)),   # x
                pl.BlockSpec(memory_space=pl.ANY),                    # W_ih^T
                pl.BlockSpec(memory_space=pl.ANY),                    # W_hh^T
                pl.BlockSpec(memory_space=pl.ANY),                    # W_fc^T
                pl.BlockSpec((1, 4 * Hp), lambda p, c: (0, 0)),       # gate bias
                pl.BlockSpec((1, Fp), lambda p, c: (0, 0)),           # fc bias
            ],
            out_specs=pl.BlockSpec((tc, Bs, Fp), lambda p, c: (c, p, 0)),
            scratch_shapes=[
                pltpu.VMEM((Fp, 4 * Hp), cdt),              # W_ih^T (1-buffered)
                pltpu.VMEM((Hp, 4 * Hp), cdt),              # W_hh^T (1-buffered)
                pltpu.VMEM((Hp, Fp), cdt),                  # W_fc^T (1-buffered)
                pltpu.VMEM((tc, Bs, 4 * Hp), jnp.float32),  # gate pre-acts
                pltpu.VMEM((tc, Bs, Hp), cdt),              # hidden sequence
                pltpu.VMEM((Bs, Hp), jnp.float32),          # h state
                pltpu.VMEM((Bs, Hp), jnp.float32),          # c state
                pltpu.SemaphoreType.DMA((3,)),
            ],
        ),
        compiler_params=pltpu.CompilerParams(
            dimension_semantics=("parallel", "arbitrary"),
            vmem_limit_bytes=int(budget),
        ),
    )(x_p, w_ih_t, w_hh_t, w_fc_t, b_g, b_fc_p)

    out = out_p[:T, :B, :F].astype(x.dtype)
    # TODO(synk): for multi-sequence / multi-layer workloads, pack extra
    #             independent rows into the batch dim (toward the MXU height)
    #             before any further micro-tuning.
    return out + x if diff else out


def _reference(x, params, diff=False):
    """Pure-JAX reference (lax.scan) mirroring PyTorch nn.LSTM semantics."""
    w_ih, w_hh, b_ih, b_hh, w_fc, b_fc = params
    H = w_hh.shape[1]
    T, B, F = x.shape

    def step(carry, x_t):
        h, c = carry
        gates = x_t @ w_ih.T + h @ w_hh.T + b_ih + b_hh
        i = jax.nn.sigmoid(gates[:, 0 * H:1 * H])
        f = jax.nn.sigmoid(gates[:, 1 * H:2 * H])
        g = jnp.tanh(gates[:, 2 * H:3 * H])
        o = jax.nn.sigmoid(gates[:, 3 * H:4 * H])
        c = f * c + i * g
        h = o * jnp.tanh(c)
        return (h, c), h

    (_, _), hs = jax.lax.scan(step, (jnp.zeros((B, H)), jnp.zeros((B, H))), x)
    out = hs @ w_fc.T + b_fc
    return out + x if diff else out


def init_params(key, features, lstm_units):
    """Deterministic init with PyTorch-style U(-1/sqrt(H), 1/sqrt(H))."""
    H, F = lstm_units, features
    k = 1.0 / jnp.sqrt(jnp.float32(H))
    keys = jax.random.split(key, 6)
    w_ih = jax.random.uniform(keys[0], (4 * H, F), jnp.float32, -k, k)
    w_hh = jax.random.uniform(keys[1], (4 * H, H), jnp.float32, -k, k)
    b_ih = jax.random.uniform(keys[2], (4 * H,), jnp.float32, -k, k)
    b_hh = jax.random.uniform(keys[3], (4 * H,), jnp.float32, -k, k)
    w_fc = jax.random.uniform(keys[4], (F, H), jnp.float32, -k, k)
    b_fc = jax.random.uniform(keys[5], (F,), jnp.float32, -k, k)
    return (w_ih, w_hh, b_ih, b_hh, w_fc, b_fc)


if __name__ == "__main__":
    seq, batch, features, lstm_units = 8, 2, 4, 32

    key = jax.random.PRNGKey(0)
    k_x, k_p, k_x2 = jax.random.split(key, 3)
    x = jax.random.normal(k_x, (seq, batch, features), jnp.float32)
    params = init_params(k_p, features, lstm_units)

    # 1) default (f32 matmul path) vs pure-JAX reference
    out = jax.block_until_ready(lstm_forward(x, params, diff=False))
    ref = _reference(x, params, diff=False)
    assert out.shape == (seq, batch, features)
    assert jnp.allclose(out, ref, atol=1e-4, rtol=1e-4), float(
        jnp.max(jnp.abs(out - ref)))

    # 2) diff=True path (out + x)
    out_d = jax.block_until_ready(lstm_forward(x, params, diff=True))
    ref_d = _reference(x, params, diff=True)
    assert jnp.allclose(out_d, ref_d, atol=1e-4, rtol=1e-4), float(
        jnp.max(jnp.abs(out_d - ref_d)))

    # 3) batch-sharded path (parallel leading grid axis; correct on 1-TC too)
    xb = jax.random.normal(k_x2, (seq, 16, features), jnp.float32)
    out_b = jax.block_until_ready(lstm_forward(xb, params, batch_shards=2))
    ref_b = _reference(xb, params)
    assert jnp.allclose(out_b, ref_b, atol=1e-4, rtol=1e-4), float(
        jnp.max(jnp.abs(out_b - ref_b)))

    # 4) opt-in bf16 matmul path (f32 accumulation, f32 cell state)
    out_h = jax.block_until_ready(
        lstm_forward(x, params, matmul_dtype=jnp.bfloat16))
    assert jnp.allclose(out_h, ref, atol=5e-2, rtol=5e-2), float(
        jnp.max(jnp.abs(out_h - ref)))

    print("KERNEL_OK")
</pallas_src>

<mosaic_0001>
module attributes {stable_mosaic.version = 11 : i64} {
  func.func @_lstm_fused_kernel(%arg0: i32, %arg1: i32, %arg2: memref<8x8x128xf32, #tpu.memory_space<vmem>>, %arg3: memref<128x512xf32, #tpu.memory_space<any>>, %arg4: memref<128x512xf32, #tpu.memory_space<any>>, %arg5: memref<128x128xf32, #tpu.memory_space<any>>, %arg6: memref<1x512xf32, #tpu.memory_space<vmem>>, %arg7: memref<1x128xf32, #tpu.memory_space<vmem>>, %arg8: memref<8x8x128xf32, #tpu.memory_space<vmem>>, %arg9: memref<128x512xf32, #tpu.memory_space<vmem>>, %arg10: memref<128x512xf32, #tpu.memory_space<vmem>>, %arg11: memref<128x128xf32, #tpu.memory_space<vmem>>, %arg12: memref<8x8x512xf32, #tpu.memory_space<vmem>>, %arg13: memref<8x8x128xf32, #tpu.memory_space<vmem>>, %arg14: memref<8x128xf32, #tpu.memory_space<vmem>>, %arg15: memref<8x128xf32, #tpu.memory_space<vmem>>, %arg16: memref<3x!tpu.dma_semaphore, #tpu.memory_space<semaphore_mem>>) attributes {dimension_semantics = [#tpu.dimension_semantics<parallel>, #tpu.dimension_semantics<arbitrary>], iteration_bounds = array<i64: 1, 1>, scalar_prefetch = 0 : i64, scratch_operands = 8 : i64, tpu.core_type = #tpu.core_type<tc>, window_params = [{transform_indices = @transform_0, window_bounds = array<i64: 8, 8, 128>}, {}, {}, {}, {pipeline_mode = #tpu.pipeline_mode<synchronous>, transform_indices = @transform_4, window_bounds = array<i64: 1, 512>}, {pipeline_mode = #tpu.pipeline_mode<synchronous>, transform_indices = @transform_5, window_bounds = array<i64: 1, 128>}, {transform_indices = @transform_6, window_bounds = array<i64: 8, 8, 128>}]} {
    %c0_i32 = arith.constant 0 : i32
    %0 = arith.cmpi eq, %arg1, %c0_i32 : i32
    %1 = arith.extui %0 : i1 to i32
    %c0_i32_0 = arith.constant 0 : i32
    %2 = arith.cmpi ne, %1, %c0_i32_0 : i32
    scf.if %2 {
      %c0_i32_144 = arith.constant 0 : i32
      %346 = tpu.memref_slice %arg16[%c0_i32_144] : memref<3x!tpu.dma_semaphore, #tpu.memory_space<semaphore_mem>> -> memref<1x!tpu.dma_semaphore, #tpu.memory_space<semaphore_mem>>
      %347 = tpu.memref_squeeze %346 : memref<1x!tpu.dma_semaphore, #tpu.memory_space<semaphore_mem>> -> memref<!tpu.dma_semaphore, #tpu.memory_space<semaphore_mem>>
      tpu.enqueue_dma source(%arg3 : memref<128x512xf32, #tpu.memory_space<any>>) target(%arg9 : memref<128x512xf32, #tpu.memory_space<vmem>>) target_semaphore(%347 : memref<!tpu.dma_semaphore, #tpu.memory_space<semaphore_mem>>)
      %c1_i32_145 = arith.constant 1 : i32
      %348 = tpu.memref_slice %arg16[%c1_i32_145] : memref<3x!tpu.dma_semaphore, #tpu.memory_space<semaphore_mem>> -> memref<1x!tpu.dma_semaphore, #tpu.memory_space<semaphore_mem>>
      %349 = tpu.memref_squeeze %348 : memref<1x!tpu.dma_semaphore, #tpu.memory_space<semaphore_mem>> -> memref<!tpu.dma_semaphore, #tpu.memory_space<semaphore_mem>>
      tpu.enqueue_dma source(%arg4 : memref<128x512xf32, #tpu.memory_space<any>>) target(%arg10 : memref<128x512xf32, #tpu.memory_space<vmem>>) target_semaphore(%349 : memref<!tpu.dma_semaphore, #tpu.memory_space<semaphore_mem>>)
      %c2_i32_146 = arith.constant 2 : i32
      %350 = tpu.memref_slice %arg16[%c2_i32_146] : memref<3x!tpu.dma_semaphore, #tpu.memory_space<semaphore_mem>> -> memref<1x!tpu.dma_semaphore, #tpu.memory_space<semaphore_mem>>
      %351 = tpu.memref_squeeze %350 : memref<1x!tpu.dma_semaphore, #tpu.memory_space<semaphore_mem>> -> memref<!tpu.dma_semaphore, #tpu.memory_space<semaphore_mem>>
      tpu.enqueue_dma source(%arg5 : memref<128x128xf32, #tpu.memory_space<any>>) target(%arg11 : memref<128x128xf32, #tpu.memory_space<vmem>>) target_semaphore(%351 : memref<!tpu.dma_semaphore, #tpu.memory_space<semaphore_mem>>)
      %cst_147 = arith.constant 0.000000e+00 : f32
      %352 = vector.broadcast %cst_147 : f32 to vector<8x128xf32>
      %c0_148 = arith.constant 0 : index
      %c0_149 = arith.constant 0 : index
      %353 = vector.load %arg14[%c0_148, %c0_149] : memref<8x128xf32, #tpu.memory_space<vmem>>, vector<8x128xf32>
      tpu.vector_store %arg14[%c0_148, %c0_149], %352 {strides = array<i32>} : memref<8x128xf32, #tpu.memory_space<vmem>>, vector<8x128xf32>,
      %cst_150 = arith.constant 0.000000e+00 : f32
      %354 = vector.broadcast %cst_150 : f32 to vector<8x128xf32>
      %c0_151 = arith.constant 0 : index
      %c0_152 = arith.constant 0 : index
      %355 = vector.load %arg15[%c0_151, %c0_152] : memref<8x128xf32, #tpu.memory_space<vmem>>, vector<8x128xf32>
      tpu.vector_store %arg15[%c0_151, %c0_152], %354 {strides = array<i32>} : memref<8x128xf32, #tpu.memory_space<vmem>>, vector<8x128xf32>,
      %c0_i32_153 = arith.constant 0 : i32
      %356 = tpu.memref_slice %arg16[%c0_i32_153] : memref<3x!tpu.dma_semaphore, #tpu.memory_space<semaphore_mem>> -> memref<1x!tpu.dma_semaphore, #tpu.memory_space<semaphore_mem>>
      %357 = tpu.memref_squeeze %356 : memref<1x!tpu.dma_semaphore, #tpu.memory_space<semaphore_mem>> -> memref<!tpu.dma_semaphore, #tpu.memory_space<semaphore_mem>>
      tpu.wait_dma2 semaphore(%357 : memref<!tpu.dma_semaphore, #tpu.memory_space<semaphore_mem>>) src(%arg3 : memref<128x512xf32, #tpu.memory_space<any>>) dst(%arg9 : memref<128x512xf32, #tpu.memory_space<vmem>>)
      %c1_i32_154 = arith.constant 1 : i32
      %358 = tpu.memref_slice %arg16[%c1_i32_154] : memref<3x!tpu.dma_semaphore, #tpu.memory_space<semaphore_mem>> -> memref<1x!tpu.dma_semaphore, #tpu.memory_space<semaphore_mem>>
      %359 = tpu.memref_squeeze %358 : memref<1x!tpu.dma_semaphore, #tpu.memory_space<semaphore_mem>> -> memref<!tpu.dma_semaphore, #tpu.memory_space<semaphore_mem>>
      tpu.wait_dma2 semaphore(%359 : memref<!tpu.dma_semaphore, #tpu.memory_space<semaphore_mem>>) src(%arg4 : memref<128x512xf32, #tpu.memory_space<any>>) dst(%arg10 : memref<128x512xf32, #tpu.memory_space<vmem>>)
      %c2_i32_155 = arith.constant 2 : i32
      %360 = tpu.memref_slice %arg16[%c2_i32_155] : memref<3x!tpu.dma_semaphore, #tpu.memory_space<semaphore_mem>> -> memref<1x!tpu.dma_semaphore, #tpu.memory_space<semaphore_mem>>
      %361 = tpu.memref_squeeze %360 : memref<1x!tpu.dma_semaphore, #tpu.memory_space<semaphore_mem>> -> memref<!tpu.dma_semaphore, #tpu.memory_space<semaphore_mem>>
      tpu.wait_dma2 semaphore(%361 : memref<!tpu.dma_semaphore, #tpu.memory_space<semaphore_mem>>) src(%arg5 : memref<128x128xf32, #tpu.memory_space<any>>) dst(%arg11 : memref<128x128xf32, #tpu.memory_space<vmem>>)
    } else {
    }
    %c0 = arith.constant 0 : index
    %c0_1 = arith.constant 0 : index
    %c0_2 = arith.constant 0 : index
    %3 = vector.load %arg2[%c0, %c0_1, %c0_2] : memref<8x8x128xf32, #tpu.memory_space<vmem>>, vector<8x8x128xf32>
    %4 = vector.shape_cast %3 : vector<8x8x128xf32> to vector<64x128xf32>
    %c0_3 = arith.constant 0 : index
    %c0_4 = arith.constant 0 : index
    %5 = vector.load %arg9[%c0_3, %c0_4] : memref<128x512xf32, #tpu.memory_space<vmem>>, vector<128x512xf32>
    %cst = arith.constant dense<0.000000e+00> : vector<64x512xf32>
    %6 = tpu.matmul %4, %5, %cst {dimension_numbers = #tpu.dot_dimension_numbers<[1], [0], [0], [1], [0, 0, 1, 1], [], []>} : vector<64x128xf32>, vector<128x512xf32>, vector<64x512xf32> -> vector<64x512xf32>
    %c0_5 = arith.constant 0 : index
    %c0_6 = arith.constant 0 : index
    %7 = vector.load %arg6[%c0_5, %c0_6] : memref<1x512xf32, #tpu.memory_space<vmem>>, vector<1x512xf32>
    %8 = vector.broadcast %7 : vector<1x512xf32> to vector<64x512xf32>
    %9 = arith.addf %6, %8 : vector<64x512xf32>
    %10 = vector.shape_cast %9 : vector<64x512xf32> to vector<8x8x512xf32>
    %c0_7 = arith.constant 0 : index
    %c0_8 = arith.constant 0 : index
    %c0_9 = arith.constant 0 : index
    %11 = vector.load %arg12[%c0_7, %c0_8, %c0_9] : memref<8x8x512xf32, #tpu.memory_space<vmem>>, vector<8x8x512xf32>
    tpu.vector_store %arg12[%c0_7, %c0_8, %c0_9], %10 {strides = array<i32>} : memref<8x8x512xf32, #tpu.memory_space<vmem>>, vector<8x8x512xf32>,
    %c0_10 = arith.constant 0 : index
    %c0_11 = arith.constant 0 : index
    %12 = vector.load %arg10[%c0_10, %c0_11] : memref<128x512xf32, #tpu.memory_space<vmem>>, vector<128x512xf32>
    %c0_12 = arith.constant 0 : index
    %c0_13 = arith.constant 0 : index
    %13 = vector.load %arg14[%c0_12, %c0_13] : memref<8x128xf32, #tpu.memory_space<vmem>>, vector<8x128xf32>
    %c0_14 = arith.constant 0 : index
    %c0_15 = arith.constant 0 : index
    %14 = vector.load %arg15[%c0_14, %c0_15] : memref<8x128xf32, #tpu.memory_space<vmem>>, vector<8x128xf32>
    %c0_i32_16 = arith.constant 0 : i32
    %15 = arith.index_cast %c0_i32_16 : i32 to index
    %c0_17 = arith.constant 0 : index
    %c0_18 = arith.constant 0 : index
    %16 = vector.load %arg12[%15, %c0_17, %c0_18] : memref<8x8x512xf32, #tpu.memory_space<vmem>>, vector<1x8x512xf32>
    %17 = vector.shape_cast %16 : vector<1x8x512xf32> to vector<8x512xf32>
    %cst_19 = arith.constant dense<0.000000e+00> : vector<8x512xf32>
    %18 = tpu.matmul %13, %12, %cst_19 {dimension_numbers = #tpu.dot_dimension_numbers<[1], [0], [0], [1], [0, 0, 1, 1], [], []>} : vector<8x128xf32>, vector<128x512xf32>, vector<8x512xf32> -> vector<8x512xf32>
    %19 = arith.addf %17, %18 : vector<8x512xf32>
    %20 = vector.extract_strided_slice %19 {offsets = [0, 0], sizes = [8, 128], strides = [1, 1]} : vector<8x512xf32> to vector<8x128xf32>
    %cst_20 = arith.constant 5.000000e-01 : f32
    %21 = vector.broadcast %cst_20 : f32 to vector<8x128xf32>
    %22 = arith.mulf %21, %20 : vector<8x128xf32>
    %23 = math.tanh %22 : vector<8x128xf32>
    %cst_21 = arith.constant 5.000000e-01 : f32
    %24 = vector.broadcast %cst_21 : f32 to vector<8x128xf32>
    %25 = arith.mulf %24, %23 : vector<8x128xf32>
    %cst_22 = arith.constant 5.000000e-01 : f32
    %26 = vector.broadcast %cst_22 : f32 to vector<8x128xf32>
    %27 = arith.addf %25, %26 : vector<8x128xf32>
    %28 = vector.extract_strided_slice %19 {offsets = [0, 128], sizes = [8, 128], strides = [1, 1]} : vector<8x512xf32> to vector<8x128xf32>
    %cst_23 = arith.constant 5.000000e-01 : f32
    %29 = vector.broadcast %cst_23 : f32 to vector<8x128xf32>
    %30 = arith.mulf %29, %28 : vector<8x128xf32>
    %31 = math.tanh %30 : vector<8x128xf32>
    %cst_24 = arith.constant 5.000000e-01 : f32
    %32 = vector.broadcast %cst_24 : f32 to vector<8x128xf32>
    %33 = arith.mulf %32, %31 : vector<8x128xf32>
    %cst_25 = arith.constant 5.000000e-01 : f32
    %34 = vector.broadcast %cst_25 : f32 to vector<8x128xf32>
    %35 = arith.addf %33, %34 : vector<8x128xf32>
    %36 = vector.extract_strided_slice %19 {offsets = [0, 256], sizes = [8, 128], strides = [1, 1]} : vector<8x512xf32> to vector<8x128xf32>
    %37 = math.tanh %36 : vector<8x128xf32>
    %38 = vector.extract_strided_slice %19 {offsets = [0, 384], sizes = [8, 128], strides = [1, 1]} : vector<8x512xf32> to vector<8x128xf32>
    %cst_26 = arith.constant 5.000000e-01 : f32
    %39 = vector.broadcast %cst_26 : f32 to vector<8x128xf32>
    %40 = arith.mulf %39, %38 : vector<8x128xf32>
    %41 = math.tanh %40 : vector<8x128xf32>
    %cst_27 = arith.constant 5.000000e-01 : f32
    %42 = vector.broadcast %cst_27 : f32 to vector<8x128xf32>
    %43 = arith.mulf %42, %41 : vector<8x128xf32>
    %cst_28 = arith.constant 5.000000e-01 : f32
    %44 = vector.broadcast %cst_28 : f32 to vector<8x128xf32>
    %45 = arith.addf %43, %44 : vector<8x128xf32>
    %46 = arith.mulf %35, %14 : vector<8x128xf32>
    %47 = arith.mulf %27, %37 : vector<8x128xf32>
    %48 = arith.addf %46, %47 : vector<8x128xf32>
    %49 = math.tanh %48 : vector<8x128xf32>
    %50 = arith.mulf %45, %49 : vector<8x128xf32>
    %51 = arith.index_cast %c0_i32_16 : i32 to index
    %c0_29 = arith.constant 0 : index
    %c0_30 = arith.constant 0 : index
    %52 = vector.load %arg13[%51, %c0_29, %c0_30] : memref<8x8x128xf32, #tpu.memory_space<vmem>>, vector<1x8x128xf32>
    %53 = vector.shape_cast %52 : vector<1x8x128xf32> to vector<8x128xf32>
    %54 = vector.shape_cast %50 : vector<8x128xf32> to vector<1x8x128xf32>
    tpu.vector_store %arg13[%51, %c0_29, %c0_30], %54 {strides = array<i32>} : memref<8x8x128xf32, #tpu.memory_space<vmem>>, vector<1x8x128xf32>,
    %c1_i32 = arith.constant 1 : i32
    %55 = arith.index_cast %c1_i32 : i32 to index
    %c0_31 = arith.constant 0 : index
    %c0_32 = arith.constant 0 : index
    %56 = vector.load %arg12[%55, %c0_31, %c0_32] : memref<8x8x512xf32, #tpu.memory_space<vmem>>, vector<1x8x512xf32>
    %57 = vector.shape_cast %56 : vector<1x8x512xf32> to vector<8x512xf32>
    %cst_33 = arith.constant dense<0.000000e+00> : vector<8x512xf32>
    %58 = tpu.matmul %50, %12, %cst_33 {dimension_numbers = #tpu.dot_dimension_numbers<[1], [0], [0], [1], [0, 0, 1, 1], [], []>} : vector<8x128xf32>, vector<128x512xf32>, vector<8x512xf32> -> vector<8x512xf32>
    %59 = arith.addf %57, %58 : vector<8x512xf32>
    %60 = vector.extract_strided_slice %59 {offsets = [0, 0], sizes = [8, 128], strides = [1, 1]} : vector<8x512xf32> to vector<8x128xf32>
    %cst_34 = arith.constant 5.000000e-01 : f32
    %61 = vector.broadcast %cst_34 : f32 to vector<8x128xf32>
    %62 = arith.mulf %61, %60 : vector<8x128xf32>
    %63 = math.tanh %62 : vector<8x128xf32>
    %cst_35 = arith.constant 5.000000e-01 : f32
    %64 = vector.broadcast %cst_35 : f32 to vector<8x128xf32>
    %65 = arith.mulf %64, %63 : vector<8x128xf32>
    %cst_36 = arith.constant 5.000000e-01 : f32
    %66 = vector.broadcast %cst_36 : f32 to vector<8x128xf32>
    %67 = arith.addf %65, %66 : vector<8x128xf32>
    %68 = vector.extract_strided_slice %59 {offsets = [0, 128], sizes = [8, 128], strides = [1, 1]} : vector<8x512xf32> to vector<8x128xf32>
    %cst_37 = arith.constant 5.000000e-01 : f32
    %69 = vector.broadcast %cst_37 : f32 to vector<8x128xf32>
    %70 = arith.mulf %69, %68 : vector<8x128xf32>
    %71 = math.tanh %70 : vector<8x128xf32>
    %cst_38 = arith.constant 5.000000e-01 : f32
    %72 = vector.broadcast %cst_38 : f32 to vector<8x128xf32>
    %73 = arith.mulf %72, %71 : vector<8x128xf32>
    %cst_39 = arith.constant 5.000000e-01 : f32
    %74 = vector.broadcast %cst_39 : f32 to vector<8x128xf32>
    %75 = arith.addf %73, %74 : vector<8x128xf32>
    %76 = vector.extract_strided_slice %59 {offsets = [0, 256], sizes = [8, 128], strides = [1, 1]} : vector<8x512xf32> to vector<8x128xf32>
    %77 = math.tanh %76 : vector<8x128xf32>
    %78 = vector.extract_strided_slice %59 {offsets = [0, 384], sizes = [8, 128], strides = [1, 1]} : vector<8x512xf32> to vector<8x128xf32>
    %cst_40 = arith.constant 5.000000e-01 : f32
    %79 = vector.broadcast %cst_40 : f32 to vector<8x128xf32>
    %80 = arith.mulf %79, %78 : vector<8x128xf32>
    %81 = math.tanh %80 : vector<8x128xf32>
    %cst_41 = arith.constant 5.000000e-01 : f32
    %82 = vector.broadcast %cst_41 : f32 to vector<8x128xf32>
    %83 = arith.mulf %82, %81 : vector<8x128xf32>
    %cst_42 = arith.constant 5.000000e-01 : f32
    %84 = vector.broadcast %cst_42 : f32 to vector<8x128xf32>
    %85 = arith.addf %83, %84 : vector<8x128xf32>
    %86 = arith.mulf %75, %48 : vector<8x128xf32>
    %87 = arith.mulf %67, %77 : vector<8x128xf32>
    %88 = arith.addf %86, %87 : vector<8x128xf32>
    %89 = math.tanh %88 : vector<8x128xf32>
    %90 = arith.mulf %85, %89 : vector<8x128xf32>
    %91 = arith.index_cast %c1_i32 : i32 to index
    %c0_43 = arith.constant 0 : index
    %c0_44 = arith.constant 0 : index
    %92 = vector.load %arg13[%91, %c0_43, %c0_44] : memref<8x8x128xf32, #tpu.memory_space<vmem>>, vector<1x8x128xf32>
    %93 = vector.shape_cast %92 : vector<1x8x128xf32> to vector<8x128xf32>
    %94 = vector.shape_cast %90 : vector<8x128xf32> to vector<1x8x128xf32>
    tpu.vector_store %arg13[%91, %c0_43, %c0_44], %94 {strides = array<i32>} : memref<8x8x128xf32, #tpu.memory_space<vmem>>, vector<1x8x128xf32>,
    %c2_i32 = arith.constant 2 : i32
    %95 = arith.index_cast %c2_i32 : i32 to index
    %c0_45 = arith.constant 0 : index
    %c0_46 = arith.constant 0 : index
    %96 = vector.load %arg12[%95, %c0_45, %c0_46] : memref<8x8x512xf32, #tpu.memory_space<vmem>>, vector<1x8x512xf32>
    %97 = vector.shape_cast %96 : vector<1x8x512xf32> to vector<8x512xf32>
    %cst_47 = arith.constant dense<0.000000e+00> : vector<8x512xf32>
    %98 = tpu.matmul %90, %12, %cst_47 {dimension_numbers = #tpu.dot_dimension_numbers<[1], [0], [0], [1], [0, 0, 1, 1], [], []>} : vector<8x128xf32>, vector<128x512xf32>, vector<8x512xf32> -> vector<8x512xf32>
    %99 = arith.addf %97, %98 : vector<8x512xf32>
    %100 = vector.extract_strided_slice %99 {offsets = [0, 0], sizes = [8, 128], strides = [1, 1]} : vector<8x512xf32> to vector<8x128xf32>
    %cst_48 = arith.constant 5.000000e-01 : f32
    %101 = vector.broadcast %cst_48 : f32 to vector<8x128xf32>
    %102 = arith.mulf %101, %100 : vector<8x128xf32>
    %103 = math.tanh %102 : vector<8x128xf32>
    %cst_49 = arith.constant 5.000000e-01 : f32
    %104 = vector.broadcast %cst_49 : f32 to vector<8x128xf32>
    %105 = arith.mulf %104, %103 : vector<8x128xf32>
    %cst_50 = arith.constant 5.000000e-01 : f32
    %106 = vector.broadcast %cst_50 : f32 to vector<8x128xf32>
    %107 = arith.addf %105, %106 : vector<8x128xf32>
    %108 = vector.extract_strided_slice %99 {offsets = [0, 128], sizes = [8, 128], strides = [1, 1]} : vector<8x512xf32> to vector<8x128xf32>
    %cst_51 = arith.constant 5.000000e-01 : f32
    %109 = vector.broadcast %cst_51 : f32 to vector<8x128xf32>
    %110 = arith.mulf %109, %108 : vector<8x128xf32>
    %111 = math.tanh %110 : vector<8x128xf32>
    %cst_52 = arith.constant 5.000000e-01 : f32
    %112 = vector.broadcast %cst_52 : f32 to vector<8x128xf32>
    %113 = arith.mulf %112, %111 : vector<8x128xf32>
    %cst_53 = arith.constant 5.000000e-01 : f32
    %114 = vector.broadcast %cst_53 : f32 to vector<8x128xf32>
    %115 = arith.addf %113, %114 : vector<8x128xf32>
    %116 = vector.extract_strided_slice %99 {offsets = [0, 256], sizes = [8, 128], strides = [1, 1]} : vector<8x512xf32> to vector<8x128xf32>
    %117 = math.tanh %116 : vector<8x128xf32>
    %118 = vector.extract_strided_slice %99 {offsets = [0, 384], sizes = [8, 128], strides = [1, 1]} : vector<8x512xf32> to vector<8x128xf32>
    %cst_54 = arith.constant 5.000000e-01 : f32
    %119 = vector.broadcast %cst_54 : f32 to vector<8x128xf32>
    %120 = arith.mulf %119, %118 : vector<8x128xf32>
    %121 = math.tanh %120 : vector<8x128xf32>
    %cst_55 = arith.constant 5.000000e-01 : f32
    %122 = vector.broadcast %cst_55 : f32 to vector<8x128xf32>
    %123 = arith.mulf %122, %121 : vector<8x128xf32>
    %cst_56 = arith.constant 5.000000e-01 : f32
    %124 = vector.broadcast %cst_56 : f32 to vector<8x128xf32>
    %125 = arith.addf %123, %124 : vector<8x128xf32>
    %126 = arith.mulf %115, %88 : vector<8x128xf32>
    %127 = arith.mulf %107, %117 : vector<8x128xf32>
    %128 = arith.addf %126, %127 : vector<8x128xf32>
    %129 = math.tanh %128 : vector<8x128xf32>
    %130 = arith.mulf %125, %129 : vector<8x128xf32>
    %131 = arith.index_cast %c2_i32 : i32 to index
    %c0_57 = arith.constant 0 : index
    %c0_58 = arith.constant 0 : index
    %132 = vector.load %arg13[%131, %c0_57, %c0_58] : memref<8x8x128xf32, #tpu.memory_space<vmem>>, vector<1x8x128xf32>
    %133 = vector.shape_cast %132 : vector<1x8x128xf32> to vector<8x128xf32>
    %134 = vector.shape_cast %130 : vector<8x128xf32> to vector<1x8x128xf32>
    tpu.vector_store %arg13[%131, %c0_57, %c0_58], %134 {strides = array<i32>} : memref<8x8x128xf32, #tpu.memory_space<vmem>>, vector<1x8x128xf32>,
    %c3_i32 = arith.constant 3 : i32
    %135 = arith.index_cast %c3_i32 : i32 to index
    %c0_59 = arith.constant 0 : index
    %c0_60 = arith.constant 0 : index
    %136 = vector.load %arg12[%135, %c0_59, %c0_60] : memref<8x8x512xf32, #tpu.memory_space<vmem>>, vector<1x8x512xf32>
    %137 = vector.shape_cast %136 : vector<1x8x512xf32> to vector<8x512xf32>
    %cst_61 = arith.constant dense<0.000000e+00> : vector<8x512xf32>
    %138 = tpu.matmul %130, %12, %cst_61 {dimension_numbers = #tpu.dot_dimension_numbers<[1], [0], [0], [1], [0, 0, 1, 1], [], []>} : vector<8x128xf32>, vector<128x512xf32>, vector<8x512xf32> -> vector<8x512xf32>
    %139 = arith.addf %137, %138 : vector<8x512xf32>
    %140 = vector.extract_strided_slice %139 {offsets = [0, 0], sizes = [8, 128], strides = [1, 1]} : vector<8x512xf32> to vector<8x128xf32>
    %cst_62 = arith.constant 5.000000e-01 : f32
    %141 = vector.broadcast %cst_62 : f32 to vector<8x128xf32>
    %142 = arith.mulf %141, %140 : vector<8x128xf32>
    %143 = math.tanh %142 : vector<8x128xf32>
    %cst_63 = arith.constant 5.000000e-01 : f32
    %144 = vector.broadcast %cst_63 : f32 to vector<8x128xf32>
    %145 = arith.mulf %144, %143 : vector<8x128xf32>
    %cst_64 = arith.constant 5.000000e-01 : f32
    %146 = vector.broadcast %cst_64 : f32 to vector<8x128xf32>
    %147 = arith.addf %145, %146 : vector<8x128xf32>
    %148 = vector.extract_strided_slice %139 {offsets = [0, 128], sizes = [8, 128], strides = [1, 1]} : vector<8x512xf32> to vector<8x128xf32>
    %cst_65 = arith.constant 5.000000e-01 : f32
    %149 = vector.broadcast %cst_65 : f32 to vector<8x128xf32>
    %150 = arith.mulf %149, %148 : vector<8x128xf32>
    %151 = math.tanh %150 : vector<8x128xf32>
    %cst_66 = arith.constant 5.000000e-01 : f32
    %152 = vector.broadcast %cst_66 : f32 to vector<8x128xf32>
    %153 = arith.mulf %152, %151 : vector<8x128xf32>
    %cst_67 = arith.constant 5.000000e-01 : f32
    %154 = vector.broadcast %cst_67 : f32 to vector<8x128xf32>
    %155 = arith.addf %153, %154 : vector<8x128xf32>
    %156 = vector.extract_strided_slice %139 {offsets = [0, 256], sizes = [8, 128], strides = [1, 1]} : vector<8x512xf32> to vector<8x128xf32>
    %157 = math.tanh %156 : vector<8x128xf32>
    %158 = vector.extract_strided_slice %139 {offsets = [0, 384], sizes = [8, 128], strides = [1, 1]} : vector<8x512xf32> to vector<8x128xf32>
    %cst_68 = arith.constant 5.000000e-01 : f32
    %159 = vector.broadcast %cst_68 : f32 to vector<8x128xf32>
    %160 = arith.mulf %159, %158 : vector<8x128xf32>
    %161 = math.tanh %160 : vector<8x128xf32>
    %cst_69 = arith.constant 5.000000e-01 : f32
    %162 = vector.broadcast %cst_69 : f32 to vector<8x128xf32>
    %163 = arith.mulf %162, %161 : vector<8x128xf32>
    %cst_70 = arith.constant 5.000000e-01 : f32
    %164 = vector.broadcast %cst_70 : f32 to vector<8x128xf32>
    %165 = arith.addf %163, %164 : vector<8x128xf32>
    %166 = arith.mulf %155, %128 : vector<8x128xf32>
    %167 = arith.mulf %147, %157 : vector<8x128xf32>
    %168 = arith.addf %166, %167 : vector<8x128xf32>
    %169 = math.tanh %168 : vector<8x128xf32>
    %170 = arith.mulf %165, %169 : vector<8x128xf32>
    %171 = arith.index_cast %c3_i32 : i32 to index
    %c0_71 = arith.constant 0 : index
    %c0_72 = arith.constant 0 : index
    %172 = vector.load %arg13[%171, %c0_71, %c0_72] : memref<8x8x128xf32, #tpu.memory_space<vmem>>, vector<1x8x128xf32>
    %173 = vector.shape_cast %172 : vector<1x8x128xf32> to vector<8x128xf32>
    %174 = vector.shape_cast %170 : vector<8x128xf32> to vector<1x8x128xf32>
    tpu.vector_store %arg13[%171, %c0_71, %c0_72], %174 {strides = array<i32>} : memref<8x8x128xf32, #tpu.memory_space<vmem>>, vector<1x8x128xf32>,
    %c4_i32 = arith.constant 4 : i32
    %175 = arith.index_cast %c4_i32 : i32 to index
    %c0_73 = arith.constant 0 : index
    %c0_74 = arith.constant 0 : index
    %176 = vector.load %arg12[%175, %c0_73, %c0_74] : memref<8x8x512xf32, #tpu.memory_space<vmem>>, vector<1x8x512xf32>
    %177 = vector.shape_cast %176 : vector<1x8x512xf32> to vector<8x512xf32>
    %cst_75 = arith.constant dense<0.000000e+00> : vector<8x512xf32>
    %178 = tpu.matmul %170, %12, %cst_75 {dimension_numbers = #tpu.dot_dimension_numbers<[1], [0], [0], [1], [0, 0, 1, 1], [], []>} : vector<8x128xf32>, vector<128x512xf32>, vector<8x512xf32> -> vector<8x512xf32>
    %179 = arith.addf %177, %178 : vector<8x512xf32>
    %180 = vector.extract_strided_slice %179 {offsets = [0, 0], sizes = [8, 128], strides = [1, 1]} : vector<8x512xf32> to vector<8x128xf32>
    %cst_76 = arith.constant 5.000000e-01 : f32
    %181 = vector.broadcast %cst_76 : f32 to vector<8x128xf32>
    %182 = arith.mulf %181, %180 : vector<8x128xf32>
    %183 = math.tanh %182 : vector<8x128xf32>
    %cst_77 = arith.constant 5.000000e-01 : f32
    %184 = vector.broadcast %cst_77 : f32 to vector<8x128xf32>
    %185 = arith.mulf %184, %183 : vector<8x128xf32>
    %cst_78 = arith.constant 5.000000e-01 : f32
    %186 = vector.broadcast %cst_78 : f32 to vector<8x128xf32>
    %187 = arith.addf %185, %186 : vector<8x128xf32>
    %188 = vector.extract_strided_slice %179 {offsets = [0, 128], sizes = [8, 128], strides = [1, 1]} : vector<8x512xf32> to vector<8x128xf32>
    %cst_79 = arith.constant 5.000000e-01 : f32
    %189 = vector.broadcast %cst_79 : f32 to vector<8x128xf32>
    %190 = arith.mulf %189, %188 : vector<8x128xf32>
    %191 = math.tanh %190 : vector<8x128xf32>
    %cst_80 = arith.constant 5.000000e-01 : f32
    %192 = vector.broadcast %cst_80 : f32 to vector<8x128xf32>
    %193 = arith.mulf %192, %191 : vector<8x128xf32>
    %cst_81 = arith.constant 5.000000e-01 : f32
    %194 = vector.broadcast %cst_81 : f32 to vector<8x128xf32>
    %195 = arith.addf %193, %194 : vector<8x128xf32>
    %196 = vector.extract_strided_slice %179 {offsets = [0, 256], sizes = [8, 128], strides = [1, 1]} : vector<8x512xf32> to vector<8x128xf32>
    %197 = math.tanh %196 : vector<8x128xf32>
    %198 = vector.extract_strided_slice %179 {offsets = [0, 384], sizes = [8, 128], strides = [1, 1]} : vector<8x512xf32> to vector<8x128xf32>
    %cst_82 = arith.constant 5.000000e-01 : f32
    %199 = vector.broadcast %cst_82 : f32 to vector<8x128xf32>
    %200 = arith.mulf %199, %198 : vector<8x128xf32>
    %201 = math.tanh %200 : vector<8x128xf32>
    %cst_83 = arith.constant 5.000000e-01 : f32
    %202 = vector.broadcast %cst_83 : f32 to vector<8x128xf32>
    %203 = arith.mulf %202, %201 : vector<8x128xf32>
    %cst_84 = arith.constant 5.000000e-01 : f32
    %204 = vector.broadcast %cst_84 : f32 to vector<8x128xf32>
    %205 = arith.addf %203, %204 : vector<8x128xf32>
    %206 = arith.mulf %195, %168 : vector<8x128xf32>
    %207 = arith.mulf %187, %197 : vector<8x128xf32>
    %208 = arith.addf %206, %207 : vector<8x128xf32>
    %209 = math.tanh %208 : vector<8x128xf32>
    %210 = arith.mulf %205, %209 : vector<8x128xf32>
    %211 = arith.index_cast %c4_i32 : i32 to index
    %c0_85 = arith.constant 0 : index
    %c0_86 = arith.constant 0 : index
    %212 = vector.load %arg13[%211, %c0_85, %c0_86] : memref<8x8x128xf32, #tpu.memory_space<vmem>>, vector<1x8x128xf32>
    %213 = vector.shape_cast %212 : vector<1x8x128xf32> to vector<8x128xf32>
    %214 = vector.shape_cast %210 : vector<8x128xf32> to vector<1x8x128xf32>
    tpu.vector_store %arg13[%211, %c0_85, %c0_86], %214 {strides = array<i32>} : memref<8x8x128xf32, #tpu.memory_space<vmem>>, vector<1x8x128xf32>,
    %c5_i32 = arith.constant 5 : i32
    %215 = arith.index_cast %c5_i32 : i32 to index
    %c0_87 = arith.constant 0 : index
    %c0_88 = arith.constant 0 : index
    %216 = vector.load %arg12[%215, %c0_87, %c0_88] : memref<8x8x512xf32, #tpu.memory_space<vmem>>, vector<1x8x512xf32>
    %217 = vector.shape_cast %216 : vector<1x8x512xf32> to vector<8x512xf32>
    %cst_89 = arith.constant dense<0.000000e+00> : vector<8x512xf32>
    %218 = tpu.matmul %210, %12, %cst_89 {dimension_numbers = #tpu.dot_dimension_numbers<[1], [0], [0], [1], [0, 0, 1, 1], [], []>} : vector<8x128xf32>, vector<128x512xf32>, vector<8x512xf32> -> vector<8x512xf32>
    %219 = arith.addf %217, %218 : vector<8x512xf32>
    %220 = vector.extract_strided_slice %219 {offsets = [0, 0], sizes = [8, 128], strides = [1, 1]} : vector<8x512xf32> to vector<8x128xf32>
    %cst_90 = arith.constant 5.000000e-01 : f32
    %221 = vector.broadcast %cst_90 : f32 to vector<8x128xf32>
    %222 = arith.mulf %221, %220 : vector<8x128xf32>
    %223 = math.tanh %222 : vector<8x128xf32>
    %cst_91 = arith.constant 5.000000e-01 : f32
    %224 = vector.broadcast %cst_91 : f32 to vector<8x128xf32>
    %225 = arith.mulf %224, %223 : vector<8x128xf32>
    %cst_92 = arith.constant 5.000000e-01 : f32
    %226 = vector.broadcast %cst_92 : f32 to vector<8x128xf32>
    %227 = arith.addf %225, %226 : vector<8x128xf32>
    %228 = vector.extract_strided_slice %219 {offsets = [0, 128], sizes = [8, 128], strides = [1, 1]} : vector<8x512xf32> to vector<8x128xf32>
    %cst_93 = arith.constant 5.000000e-01 : f32
    %229 = vector.broadcast %cst_93 : f32 to vector<8x128xf32>
    %230 = arith.mulf %229, %228 : vector<8x128xf32>
    %231 = math.tanh %230 : vector<8x128xf32>
    %cst_94 = arith.constant 5.000000e-01 : f32
    %232 = vector.broadcast %cst_94 : f32 to vector<8x128xf32>
    %233 = arith.mulf %232, %231 : vector<8x128xf32>
    %cst_95 = arith.constant 5.000000e-01 : f32
    %234 = vector.broadcast %cst_95 : f32 to vector<8x128xf32>
    %235 = arith.addf %233, %234 : vector<8x128xf32>
    %236 = vector.extract_strided_slice %219 {offsets = [0, 256], sizes = [8, 128], strides = [1, 1]} : vector<8x512xf32> to vector<8x128xf32>
    %237 = math.tanh %236 : vector<8x128xf32>
    %238 = vector.extract_strided_slice %219 {offsets = [0, 384], sizes = [8, 128], strides = [1, 1]} : vector<8x512xf32> to vector<8x128xf32>
    %cst_96 = arith.constant 5.000000e-01 : f32
    %239 = vector.broadcast %cst_96 : f32 to vector<8x128xf32>
    %240 = arith.mulf %239, %238 : vector<8x128xf32>
    %241 = math.tanh %240 : vector<8x128xf32>
    %cst_97 = arith.constant 5.000000e-01 : f32
    %242 = vector.broadcast %cst_97 : f32 to vector<8x128xf32>
    %243 = arith.mulf %242, %241 : vector<8x128xf32>
    %cst_98 = arith.constant 5.000000e-01 : f32
    %244 = vector.broadcast %cst_98 : f32 to vector<8x128xf32>
    %245 = arith.addf %243, %244 : vector<8x128xf32>
    %246 = arith.mulf %235, %208 : vector<8x128xf32>
    %247 = arith.mulf %227, %237 : vector<8x128xf32>
    %248 = arith.addf %246, %247 : vector<8x128xf32>
    %249 = math.tanh %248 : vector<8x128xf32>
    %250 = arith.mulf %245, %249 : vector<8x128xf32>
    %251 = arith.index_cast %c5_i32 : i32 to index
    %c0_99 = arith.constant 0 : index
    %c0_100 = arith.constant 0 : index
    %252 = vector.load %arg13[%251, %c0_99, %c0_100] : memref<8x8x128xf32, #tpu.memory_space<vmem>>, vector<1x8x128xf32>
    %253 = vector.shape_cast %252 : vector<1x8x128xf32> to vector<8x128xf32>
    %254 = vector.shape_cast %250 : vector<8x128xf32> to vector<1x8x128xf32>
    tpu.vector_store %arg13[%251, %c0_99, %c0_100], %254 {strides = array<i32>} : memref<8x8x128xf32, #tpu.memory_space<vmem>>, vector<1x8x128xf32>,
    %c6_i32 = arith.constant 6 : i32
    %255 = arith.index_cast %c6_i32 : i32 to index
    %c0_101 = arith.constant 0 : index
    %c0_102 = arith.constant 0 : index
    %256 = vector.load %arg12[%255, %c0_101, %c0_102] : memref<8x8x512xf32, #tpu.memory_space<vmem>>, vector<1x8x512xf32>
    %257 = vector.shape_cast %256 : vector<1x8x512xf32> to vector<8x512xf32>
    %cst_103 = arith.constant dense<0.000000e+00> : vector<8x512xf32>
    %258 = tpu.matmul %250, %12, %cst_103 {dimension_numbers = #tpu.dot_dimension_numbers<[1], [0], [0], [1], [0, 0, 1, 1], [], []>} : vector<8x128xf32>, vector<128x512xf32>, vector<8x512xf32> -> vector<8x512xf32>
    %259 = arith.addf %257, %258 : vector<8x512xf32>
    %260 = vector.extract_strided_slice %259 {offsets = [0, 0], sizes = [8, 128], strides = [1, 1]} : vector<8x512xf32> to vector<8x128xf32>
    %cst_104 = arith.constant 5.000000e-01 : f32
    %261 = vector.broadcast %cst_104 : f32 to vector<8x128xf32>
    %262 = arith.mulf %261, %260 : vector<8x128xf32>
    %263 = math.tanh %262 : vector<8x128xf32>
    %cst_105 = arith.constant 5.000000e-01 : f32
    %264 = vector.broadcast %cst_105 : f32 to vector<8x128xf32>
    %265 = arith.mulf %264, %263 : vector<8x128xf32>
    %cst_106 = arith.constant 5.000000e-01 : f32
    %266 = vector.broadcast %cst_106 : f32 to vector<8x128xf32>
    %267 = arith.addf %265, %266 : vector<8x128xf32>
    %268 = vector.extract_strided_slice %259 {offsets = [0, 128], sizes = [8, 128], strides = [1, 1]} : vector<8x512xf32> to vector<8x128xf32>
    %cst_107 = arith.constant 5.000000e-01 : f32
    %269 = vector.broadcast %cst_107 : f32 to vector<8x128xf32>
    %270 = arith.mulf %269, %268 : vector<8x128xf32>
    %271 = math.tanh %270 : vector<8x128xf32>
    %cst_108 = arith.constant 5.000000e-01 : f32
    %272 = vector.broadcast %cst_108 : f32 to vector<8x128xf32>
    %273 = arith.mulf %272, %271 : vector<8x128xf32>
    %cst_109 = arith.constant 5.000000e-01 : f32
    %274 = vector.broadcast %cst_109 : f32 to vector<8x128xf32>
    %275 = arith.addf %273, %274 : vector<8x128xf32>
    %276 = vector.extract_strided_slice %259 {offsets = [0, 256], sizes = [8, 128], strides = [1, 1]} : vector<8x512xf32> to vector<8x128xf32>
    %277 = math.tanh %276 : vector<8x128xf32>
    %278 = vector.extract_strided_slice %259 {offsets = [0, 384], sizes = [8, 128], strides = [1, 1]} : vector<8x512xf32> to vector<8x128xf32>
    %cst_110 = arith.constant 5.000000e-01 : f32
    %279 = vector.broadcast %cst_110 : f32 to vector<8x128xf32>
    %280 = arith.mulf %279, %278 : vector<8x128xf32>
    %281 = math.tanh %280 : vector<8x128xf32>
    %cst_111 = arith.constant 5.000000e-01 : f32
    %282 = vector.broadcast %cst_111 : f32 to vector<8x128xf32>
    %283 = arith.mulf %282, %281 : vector<8x128xf32>
    %cst_112 = arith.constant 5.000000e-01 : f32
    %284 = vector.broadcast %cst_112 : f32 to vector<8x128xf32>
    %285 = arith.addf %283, %284 : vector<8x128xf32>
    %286 = arith.mulf %275, %248 : vector<8x128xf32>
    %287 = arith.mulf %267, %277 : vector<8x128xf32>
    %288 = arith.addf %286, %287 : vector<8x128xf32>
    %289 = math.tanh %288 : vector<8x128xf32>
    %290 = arith.mulf %285, %289 : vector<8x128xf32>
    %291 = arith.index_cast %c6_i32 : i32 to index
    %c0_113 = arith.constant 0 : index
    %c0_114 = arith.constant 0 : index
    %292 = vector.load %arg13[%291, %c0_113, %c0_114] : memref<8x8x128xf32, #tpu.memory_space<vmem>>, vector<1x8x128xf32>
    %293 = vector.shape_cast %292 : vector<1x8x128xf32> to vector<8x128xf32>
    %294 = vector.shape_cast %290 : vector<8x128xf32> to vector<1x8x128xf32>
    tpu.vector_store %arg13[%291, %c0_113, %c0_114], %294 {strides = array<i32>} : memref<8x8x128xf32, #tpu.memory_space<vmem>>, vector<1x8x128xf32>,
    %c7_i32 = arith.constant 7 : i32
    %295 = arith.index_cast %c7_i32 : i32 to index
    %c0_115 = arith.constant 0 : index
    %c0_116 = arith.constant 0 : index
    %296 = vector.load %arg12[%295, %c0_115, %c0_116] : memref<8x8x512xf32, #tpu.memory_space<vmem>>, vector<1x8x512xf32>
    %297 = vector.shape_cast %296 : vector<1x8x512xf32> to vector<8x512xf32>
    %cst_117 = arith.constant dense<0.000000e+00> : vector<8x512xf32>
    %298 = tpu.matmul %290, %12, %cst_117 {dimension_numbers = #tpu.dot_dimension_numbers<[1], [0], [0], [1], [0, 0, 1, 1], [], []>} : vector<8x128xf32>, vector<128x512xf32>, vector<8x512xf32> -> vector<8x512xf32>
    %299 = arith.addf %297, %298 : vector<8x512xf32>
    %300 = vector.extract_strided_slice %299 {offsets = [0, 0], sizes = [8, 128], strides = [1, 1]} : vector<8x512xf32> to vector<8x128xf32>
    %cst_118 = arith.constant 5.000000e-01 : f32
    %301 = vector.broadcast %cst_118 : f32 to vector<8x128xf32>
    %302 = arith.mulf %301, %300 : vector<8x128xf32>
    %303 = math.tanh %302 : vector<8x128xf32>
    %cst_119 = arith.constant 5.000000e-01 : f32
    %304 = vector.broadcast %cst_119 : f32 to vector<8x128xf32>
    %305 = arith.mulf %304, %303 : vector<8x128xf32>
    %cst_120 = arith.constant 5.000000e-01 : f32
    %306 = vector.broadcast %cst_120 : f32 to vector<8x128xf32>
    %307 = arith.addf %305, %306 : vector<8x128xf32>
    %308 = vector.extract_strided_slice %299 {offsets = [0, 128], sizes = [8, 128], strides = [1, 1]} : vector<8x512xf32> to vector<8x128xf32>
    %cst_121 = arith.constant 5.000000e-01 : f32
    %309 = vector.broadcast %cst_121 : f32 to vector<8x128xf32>
    %310 = arith.mulf %309, %308 : vector<8x128xf32>
    %311 = math.tanh %310 : vector<8x128xf32>
    %cst_122 = arith.constant 5.000000e-01 : f32
    %312 = vector.broadcast %cst_122 : f32 to vector<8x128xf32>
    %313 = arith.mulf %312, %311 : vector<8x128xf32>
    %cst_123 = arith.constant 5.000000e-01 : f32
    %314 = vector.broadcast %cst_123 : f32 to vector<8x128xf32>
    %315 = arith.addf %313, %314 : vector<8x128xf32>
    %316 = vector.extract_strided_slice %299 {offsets = [0, 256], sizes = [8, 128], strides = [1, 1]} : vector<8x512xf32> to vector<8x128xf32>
    %317 = math.tanh %316 : vector<8x128xf32>
    %318 = vector.extract_strided_slice %299 {offsets = [0, 384], sizes = [8, 128], strides = [1, 1]} : vector<8x512xf32> to vector<8x128xf32>
    %cst_124 = arith.constant 5.000000e-01 : f32
    %319 = vector.broadcast %cst_124 : f32 to vector<8x128xf32>
    %320 = arith.mulf %319, %318 : vector<8x128xf32>
    %321 = math.tanh %320 : vector<8x128xf32>
    %cst_125 = arith.constant 5.000000e-01 : f32
    %322 = vector.broadcast %cst_125 : f32 to vector<8x128xf32>
    %323 = arith.mulf %322, %321 : vector<8x128xf32>
    %cst_126 = arith.constant 5.000000e-01 : f32
    %324 = vector.broadcast %cst_126 : f32 to vector<8x128xf32>
    %325 = arith.addf %323, %324 : vector<8x128xf32>
    %326 = arith.mulf %315, %288 : vector<8x128xf32>
    %327 = arith.mulf %307, %317 : vector<8x128xf32>
    %328 = arith.addf %326, %327 : vector<8x128xf32>
    %329 = math.tanh %328 : vector<8x128xf32>
    %330 = arith.mulf %325, %329 : vector<8x128xf32>
    %331 = arith.index_cast %c7_i32 : i32 to index
    %c0_127 = arith.constant 0 : index
    %c0_128 = arith.constant 0 : index
    %332 = vector.load %arg13[%331, %c0_127, %c0_128] : memref<8x8x128xf32, #tpu.memory_space<vmem>>, vector<1x8x128xf32>
    %333 = vector.shape_cast %332 : vector<1x8x128xf32> to vector<8x128xf32>
    %334 = vector.shape_cast %330 : vector<8x128xf32> to vector<1x8x128xf32>
    tpu.vector_store %arg13[%331, %c0_127, %c0_128], %334 {strides = array<i32>} : memref<8x8x128xf32, #tpu.memory_space<vmem>>, vector<1x8x128xf32>,
    %c8_i32 = arith.constant 8 : i32
    %c0_129 = arith.constant 0 : index
    %c0_130 = arith.constant 0 : index
    %335 = vector.load %arg14[%c0_129, %c0_130] : memref<8x128xf32, #tpu.memory_space<vmem>>, vector<8x128xf32>
    tpu.vector_store %arg14[%c0_129, %c0_130], %330 {strides = array<i32>} : memref<8x128xf32, #tpu.memory_space<vmem>>, vector<8x128xf32>,
    %c0_131 = arith.constant 0 : index
    %c0_132 = arith.constant 0 : index
    %336 = vector.load %arg15[%c0_131, %c0_132] : memref<8x128xf32, #tpu.memory_space<vmem>>, vector<8x128xf32>
    tpu.vector_store %arg15[%c0_131, %c0_132], %328 {strides = array<i32>} : memref<8x128xf32, #tpu.memory_space<vmem>>, vector<8x128xf32>,
    %c0_133 = arith.constant 0 : index
    %c0_134 = arith.constant 0 : index
    %c0_135 = arith.constant 0 : index
    %337 = vector.load %arg13[%c0_133, %c0_134, %c0_135] : memref<8x8x128xf32, #tpu.memory_space<vmem>>, vector<8x8x128xf32>
    %338 = vector.shape_cast %337 : vector<8x8x128xf32> to vector<64x128xf32>
    %c0_136 = arith.constant 0 : index
    %c0_137 = arith.constant 0 : index
    %339 = vector.load %arg11[%c0_136, %c0_137] : memref<128x128xf32, #tpu.memory_space<vmem>>, vector<128x128xf32>
    %cst_138 = arith.constant dense<0.000000e+00> : vector<64x128xf32>
    %340 = tpu.matmul %338, %339, %cst_138 {dimension_numbers = #tpu.dot_dimension_numbers<[1], [0], [0], [1], [0, 0, 1, 1], [], []>} : vector<64x128xf32>, vector<128x128xf32>, vector<64x128xf32> -> vector<64x128xf32>
    %c0_139 = arith.constant 0 : index
    %c0_140 = arith.constant 0 : index
    %341 = vector.load %arg7[%c0_139, %c0_140] : memref<1x128xf32, #tpu.memory_space<vmem>>, vector<1x128xf32>
    %342 = vector.broadcast %341 : vector<1x128xf32> to vector<64x128xf32>
    %343 = arith.addf %340, %342 : vector<64x128xf32>
    %344 = vector.shape_cast %343 : vector<64x128xf32> to vector<8x8x128xf32>
    %c0_141 = arith.constant 0 : index
    %c0_142 = arith.constant 0 : index
    %c0_143 = arith.constant 0 : index
    %345 = vector.load %arg8[%c0_141, %c0_142, %c0_143] : memref<8x8x128xf32, #tpu.memory_space<vmem>>, vector<8x8x128xf32>
    tpu.vector_store %arg8[%c0_141, %c0_142, %c0_143], %344 {strides = array<i32>} : memref<8x8x128xf32, #tpu.memory_space<vmem>>, vector<8x8x128xf32>,
    return
  }
  func.func @transform_0(%arg0: i32, %arg1: i32) -> (i32, i32, i32) {
    %c0_i32 = arith.constant 0 : i32
    %c0_i32_0 = arith.constant 0 : i32
    return %arg1, %arg0, %c0_i32 : i32, i32, i32
  }
  func.func @transform_4(%arg0: i32, %arg1: i32) -> (i32, i32) {
    %c0_i32 = arith.constant 0 : i32
    %c0_i32_0 = arith.constant 0 : i32
    %c0_i32_1 = arith.constant 0 : i32
    return %c0_i32, %c0_i32_0 : i32, i32
  }
  func.func @transform_5(%arg0: i32, %arg1: i32) -> (i32, i32) {
    %c0_i32 = arith.constant 0 : i32
    %c0_i32_0 = arith.constant 0 : i32
    %c0_i32_1 = arith.constant 0 : i32
    return %c0_i32, %c0_i32_0 : i32, i32
  }
  func.func @transform_6(%arg0: i32, %arg1: i32) -> (i32, i32, i32) {
    %c0_i32 = arith.constant 0 : i32
    %c0_i32_0 = arith.constant 0 : i32
    return %arg1, %arg0, %c0_i32 : i32, i32, i32
  }
}

</mosaic_0001>

<llo_original>
// kernel: tpu_custom_call.1
$region0: #{tpu_custom_call.1}
  #allocation0 [shape = 'u32[]', space=smem, size = 0x4, offset = 0x4, fixed_abs, tag = 'smem constant byte address 0x4 - core index']
  #allocation1 [shape = 'u32[144,128]{1,0:T(1,128)}', space=vmem, size = 0x12000, scoped, tag = 'internal scratch']
  #allocation2 [shape = 'f32[128,512]{1,0:T(8,128)}', space=vmem, size = 0x40000, scoped, tag = 'scratch operand']
  #allocation3 [shape = 'f32[128,512]{1,0:T(8,128)}', space=vmem, size = 0x40000, scoped, tag = 'scratch operand']
  #allocation4 [shape = 'f32[128,128]{1,0:T(8,128)}', space=vmem, size = 0x10000, scoped, tag = 'scratch operand']
  #allocation5 [shape = 'f32[8,8,512]{2,1,0:T(8,128)}', space=vmem, size = 0x20000, scoped, tag = 'scratch operand']
  #allocation6 [shape = 'f32[8,8,128]{2,1,0:T(8,128)}', space=vmem, size = 0x8000, scoped, tag = 'scratch operand']
  #allocation7 [shape = 'f32[8,128]{1,0:T(8,128)}', space=vmem, size = 0x1000, scoped, tag = 'scratch operand']
  #allocation8 [shape = 'f32[8,128]{1,0:T(8,128)}', space=vmem, size = 0x1000, scoped, tag = 'scratch operand']
  #allocation9 [shape = 's32[3]{0}', space=sflag, size = 0xc, scoped, tag = 'scratch operand']
  #allocation14 [shape = 's32[]', space=sflag, size = 0x4, offset = 0, fixed_abs, tag = 'sflag constant byte address 0x0 - dummy sync flag']
  #allocation15 [shape = 's32[]', space=sflag, size = 0x4, offset = 0, fixed_abs, tag = 'sflag constant byte address 0x0 - dummy sync flag']
  #allocation16 [shape = 'u32[]', space=smem, size = 0x4, offset = 0x44, fixed_abs, tag = 'smem constant byte address 0x44 - assertion arg 0']
  #allocation17 [shape = 'u32[]', space=smem, size = 0x4, offset = 0x48, fixed_abs, tag = 'smem constant byte address 0x48 - assertion arg 1']
  #allocation18 [shape = 's32[]', space=sflag, size = 0x4, offset = 0, fixed_abs, tag = 'sflag constant byte address 0x0 - dummy sync flag']
  #allocation19 [shape = 's32[]', space=sflag, size = 0x4, offset = 0, fixed_abs, tag = 'sflag constant byte address 0x0 - dummy sync flag']
  #allocation20 [shape = 's32[]', space=sflag, size = 0x4, offset = 0, fixed_abs, tag = 'sflag constant byte address 0x0 - dummy sync flag']
  #allocation21 [shape = 's32[]', space=sflag, size = 0x4, offset = 0, fixed_abs, tag = 'sflag constant byte address 0x0 - dummy sync flag']
  %s0 = inlined_call_operand.hbm [shape: f32[8,8,128], index: 0, kind: input, shape index: {}]
  %s1 = inlined_call_operand.hbm [shape: f32[128,512], index: 1, kind: input, shape index: {}]
  %s2 = inlined_call_operand.hbm [shape: f32[128,512], index: 2, kind: input, shape index: {}]
  %s3 = inlined_call_operand.hbm [shape: f32[128,128], index: 3, kind: input, shape index: {}]
  %s4 = inlined_call_operand.vmem [shape: f32[1,512], index: 4, kind: input, shape index: {}]
  %s5 = inlined_call_operand.vmem [shape: f32[1,128], index: 5, kind: input, shape index: {}]
  %s6 = inlined_call_operand.hbm [shape: f32[8,8,128], index: 6, kind: output, shape index: {}]
  %s7 = sld [smem:[#allocation0]]
  $region42: #{tpu_custom_call.1} parent=0
    _
  %s9 = ssub.s32 1, %s7
  %s10 = scalar_select 0, %s9, %s7
  $region1: #{tpu_custom_call.1} parent=0
    #allocation10 [shape = 'u8[32768]{0}', space=vmem, size = 0x8000, scoped, tag = 'input window, operand 0, single buffered']
    #allocation11 [shape = 's32[1]{0}', space=sflag, size = 0x4, scoped, tag = 'scoped memory for tpu_custom_call.1']
    #allocation12 [shape = 's32[1]{0}', space=sflag, size = 0x4, scoped, tag = 'scoped memory for tpu_custom_call.1']
    #allocation13 [shape = 'u8[32768]{0}', space=vmem, size = 0x8000, scoped, tag = 'output window, operand 0, single buffered']
    %11 = vsyncpa [#allocation11], 0
    %12 = vsyncpa [#allocation12], 0
    // Predicated region
    $region2: #{tpu_custom_call.1} parent=1 // pred_check
      _
    $region3: #{tpu_custom_call.1} parent=1 // pred_check_branch
      %14 = sbr.rel (0) target = $region5
    $region4: #{tpu_custom_call.1} parent=1 // pred_region
      %s16 = ssub.s32 1024, 1024
      %17 = vsyncadd [#allocation11], %s16
      %s18 = sshll.u32 [#allocation10], 4
      %s19 = int_to_ptr.vmem [resolvable:$true] %s18
      %24 = dma.hbm_to_vmem [thread:$0]  %s0, 1024, %s19, [#allocation11], 128, 128, 8
    $region5: #{tpu_custom_call.1} parent=1 // pred_fallthru
      _
    // Predicated region
    $region6: #{tpu_custom_call.1} parent=1 // pred_check
      _
    $region7: #{tpu_custom_call.1} parent=1 // pred_check_branch
      %26 = sbr.rel (0) target = $region9
    $region8: #{tpu_custom_call.1} parent=1 // pred_region
      _
    $region9: #{tpu_custom_call.1} parent=1 // pred_fallthru
      _
    // Predicated region
    $region10: #{tpu_custom_call.1} parent=1 // pred_check
      _
    $region11: #{tpu_custom_call.1} parent=1 // pred_check_branch
      %28 = sbr.rel (0) target = $region13
    $region12: #{tpu_custom_call.1} parent=1 // pred_region
      _
    $region13: #{tpu_custom_call.1} parent=1 // pred_fallthru
      _
    // Predicated region
    $region14: #{tpu_custom_call.1} parent=1 // pred_check
      _
    $region15: #{tpu_custom_call.1} parent=1 // pred_check_branch
      %30 = sbr.rel (0) target = $region17
    $region16: #{tpu_custom_call.1} parent=1 // pred_region
      %31 = dma.done [#allocation11], 1024
    $region17: #{tpu_custom_call.1} parent=1 // pred_fallthru
      _
    %p32 = scmp.eq.s32.totalorder 0, 0
    // Predicated region
    $region18: #{tpu_custom_call.1} parent=1 // pred_check
      %p33 = pneg %p32
    $region19: #{tpu_custom_call.1} parent=1 // pred_check_branch
      %35 = sbr.rel (%p33) target = $region21
    $region20: #{tpu_custom_call.1} parent=1 // pred_region
      // Predicated region
      $region22: #{tpu_custom_call.1} parent=20 // pred_check
        _
      $region23: #{tpu_custom_call.1} parent=20 // pred_check_branch
        %37 = sbr.rel target = $region25
      $region24: #{tpu_custom_call.1} parent=20 // pred_region
        %38 = sst [smem:[#allocation16]] [#allocation15]
        %39 = sst [smem:[#allocation17]] [#allocation14]
      $region25: #{tpu_custom_call.1} parent=20 // pred_fallthru
        _
      %41 = shalt.err (0)
      %s43 = sshll.u32 [#allocation2], 4
      %s44 = int_to_ptr.vmem [resolvable:$true] %s43
      %46 = dma.hbm_to_vmem [thread:$0]  %s1, 8192, %s44, [#allocation9]
      %s47 = scalar_lea.sflag [#allocation9], 1
      // Predicated region
      $region26: #{tpu_custom_call.1} parent=20 // pred_check
        _
      $region27: #{tpu_custom_call.1} parent=20 // pred_check_branch
        %49 = sbr.rel target = $region29
      $region28: #{tpu_custom_call.1} parent=20 // pred_region
        %50 = sst [smem:[#allocation16]] [#allocation19]
        %51 = sst [smem:[#allocation17]] [#allocation18]
      $region29: #{tpu_custom_call.1} parent=20 // pred_fallthru
        _
      %53 = shalt.err (0)
      %s55 = sshll.u32 [#allocation3], 4
      %s56 = int_to_ptr.vmem [resolvable:$true] %s55
      %58 = dma.hbm_to_vmem [thread:$0]  %s2, 8192, %s56, %s47
      %s59 = scalar_lea.sflag [#allocation9], 2
      // Predicated region
      $region30: #{tpu_custom_call.1} parent=20 // pred_check
        _
      $region31: #{tpu_custom_call.1} parent=20 // pred_check_branch
        %61 = sbr.rel target = $region33
      $region32: #{tpu_custom_call.1} parent=20 // pred_region
        %62 = sst [smem:[#allocation16]] [#allocation21]
        %63 = sst [smem:[#allocation17]] [#allocation20]
      $region33: #{tpu_custom_call.1} parent=20 // pred_fallthru
        _
      %65 = shalt.err (0)
      %s67 = sshll.u32 [#allocation4], 4
      %s68 = int_to_ptr.vmem [resolvable:$true] %s67
      %70 = dma.hbm_to_vmem [thread:$0]  %s3, 2048, %s68, %s59
      %71 = vst [vmem:[#allocation7] sm:$0xff] 0.0
      %72 = vst [vmem:[#allocation8] sm:$0xff] 0.0
      %s73 = smul.u32 8, 16
      %s74 = smul.u32 %s73, 4
      %s75 = sshll.u32 %s74, 4
      %76 = dma.done [#allocation9], %s75
      %s77 = sshll.u32 %s74, 4
      %78 = dma.done %s47, %s77
      %s79 = smul.u32 128, 1
      %s80 = sshll.u32 %s79, 4
      %81 = dma.done %s59, %s80
    $region21: #{tpu_custom_call.1} parent=1 // pred_fallthru
      _
    %v82 = vld [vmem:[#allocation10] sm:$0xff]
    %v83 = vld [vmem:[#allocation10 + $0x8] sm:$0xff]
    %v84 = vld [vmem:[#allocation10 + $0x10] sm:$0xff]
    %v85 = vld [vmem:[#allocation10 + $0x18] sm:$0xff]
    %v86 = vld [vmem:[#allocation10 + $0x20] sm:$0xff]
    %v87 = vld [vmem:[#allocation10 + $0x28] sm:$0xff]
    %v88 = vld [vmem:[#allocation10 + $0x30] sm:$0xff]
    %v89 = vld [vmem:[#allocation10 + $0x38] sm:$0xff]
    %v90 = vld [vmem:[#allocation2] sm:$0xff]
    %v91 = vld [vmem:[#allocation2 + $0x8] sm:$0xff]
    %v92 = vld [vmem:[#allocation2 + $0x10] sm:$0xff]
    %v93 = vld [vmem:[#allocation2 + $0x18] sm:$0xff]
    %v94 = vld [vmem:[#allocation2 + $0x20] sm:$0xff]
    %v95 = vld [vmem:[#allocation2 + $0x28] sm:$0xff]
    %v96 = vld [vmem:[#allocation2 + $0x30] sm:$0xff]
    %v97 = vld [vmem:[#allocation2 + $0x38] sm:$0xff]
    %v98 = vld [vmem:[#allocation2 + $0x40] sm:$0xff]
    %v99 = vld [vmem:[#allocation2 + $0x48] sm:$0xff]
    %v100 = vld [vmem:[#allocation2 + $0x50] sm:$0xff]
    %v101 = vld [vmem:[#allocation2 + $0x58] sm:$0xff]
    %v102 = vld [vmem:[#allocation2 + $0x60] sm:$0xff]
    %v103 = vld [vmem:[#allocation2 + $0x68] sm:$0xff]
    %v104 = vld [vmem:[#allocation2 + $0x70] sm:$0xff]
    %v105 = vld [vmem:[#allocation2 + $0x78] sm:$0xff]
    %v106 = vld [vmem:[#allocation2 + $0x80] sm:$0xff]
    %v107 = vld [vmem:[#allocation2 + $0x88] sm:$0xff]
    %v108 = vld [vmem:[#allocation2 + $0x90] sm:$0xff]
    %v109 = vld [vmem:[#allocation2 + $0x98] sm:$0xff]
    %v110 = vld [vmem:[#allocation2 + $0xa0] sm:$0xff]
    %v111 = vld [vmem:[#allocation2 + $0xa8] sm:$0xff]
    %v112 = vld [vmem:[#allocation2 + $0xb0] sm:$0xff]
    %v113 = vld [vmem:[#allocation2 + $0xb8] sm:$0xff]
    %v114 = vld [vmem:[#allocation2 + $0xc0] sm:$0xff]
    %v115 = vld [vmem:[#allocation2 + $0xc8] sm:$0xff]
    %v116 = vld [vmem:[#allocation2 + $0xd0] sm:$0xff]
    %v117 = vld [vmem:[#allocation2 + $0xd8] sm:$0xff]
    %v118 = vld [vmem:[#allocation2 + $0xe0] sm:$0xff]
    %v119 = vld [vmem:[#allocation2 + $0xe8] sm:$0xff]
    %v120 = vld [vmem:[#allocation2 + $0xf0] sm:$0xff]
    %v121 = vld [vmem:[#allocation2 + $0xf8] sm:$0xff]
    %v122 = vld [vmem:[#allocation2 + $0x100] sm:$0xff]
    %v123 = vld [vmem:[#allocation2 + $0x108] sm:$0xff]
    %v124 = vld [vmem:[#allocation2 + $0x110] sm:$0xff]
    %v125 = vld [vmem:[#allocation2 + $0x118] sm:$0xff]
    %v126 = vld [vmem:[#allocation2 + $0x120] sm:$0xff]
    %v127 = vld [vmem:[#allocation2 + $0x128] sm:$0xff]
    %v128 = vld [vmem:[#allocation2 + $0x130] sm:$0xff]
    %v129 = vld [vmem:[#allocation2 + $0x138] sm:$0xff]
    %v130 = vld [vmem:[#allocation2 + $0x140] sm:$0xff]
    %v131 = vld [vmem:[#allocation2 + $0x148] sm:$0xff]
    %v132 = vld [vmem:[#allocation2 + $0x150] sm:$0xff]
    %v133 = vld [vmem:[#allocation2 + $0x158] sm:$0xff]
    %v134 = vld [vmem:[#allocation2 + $0x160] sm:$0xff]
    %v135 = vld [vmem:[#allocation2 + $0x168] sm:$0xff]
    %v136 = vld [vmem:[#allocation2 + $0x170] sm:$0xff]
    %v137 = vld [vmem:[#allocation2 + $0x178] sm:$0xff]
    %v138 = vld [vmem:[#allocation2 + $0x180] sm:$0xff]
    %v139 = vld [vmem:[#allocation2 + $0x188] sm:$0xff]
    %v140 = vld [vmem:[#allocation2 + $0x190] sm:$0xff]
    %v141 = vld [vmem:[#allocation2 + $0x198] sm:$0xff]
    %v142 = vld [vmem:[#allocation2 + $0x1a0] sm:$0xff]
    %v143 = vld [vmem:[#allocation2 + $0x1a8] sm:$0xff]
    %v144 = vld [vmem:[#allocation2 + $0x1b0] sm:$0xff]
    %v145 = vld [vmem:[#allocation2 + $0x1b8] sm:$0xff]
    %v146 = vld [vmem:[#allocation2 + $0x1c0] sm:$0xff]
    %v147 = vld [vmem:[#allocation2 + $0x1c8] sm:$0xff]
    %v148 = vld [vmem:[#allocation2 + $0x1d0] sm:$0xff]
    %v149 = vld [vmem:[#allocation2 + $0x1d8] sm:$0xff]
    %v150 = vld [vmem:[#allocation2 + $0x1e0] sm:$0xff]
    %v151 = vld [vmem:[#allocation2 + $0x1e8] sm:$0xff]
    %v152 = vld [vmem:[#allocation2 + $0x1f0] sm:$0xff]
    %v153 = vld [vmem:[#allocation2 + $0x1f8] sm:$0xff]
    %v154 = vld [vmem:[%s4] sm:$0xf]
    %v156 = vlaneseq
    %v157 = vshrl.u32 %v156, 7
    %v158 = vsub.s32 0, %v157
    %v159 = vrot.slane %v154, %v158
    %v160 = vlaneseq
    %v161 = vshrl.u32 %v160, 7
    %v162 = vsub.s32 1, %v161
    %v163 = vrot.slane %v154, %v162
    %v164 = vlaneseq
    %v165 = vshrl.u32 %v164, 7
    %v166 = vsub.s32 2, %v165
    %v167 = vrot.slane %v154, %v166
    %v168 = vlaneseq
    %v169 = vshrl.u32 %v168, 7
    %v170 = vsub.s32 3, %v169
    %v171 = vrot.slane %v154, %v170
    %176 = vmatprep.subr.mxu0 %v91
    %177 = vmatpush1.msra.mxu0 %v90
    %178 = vmatprep.subr.mxu0 %v95
    %179 = vmatpush1.msra.mxu0 %v94
    %180 = vmatprep.subr.mxu0 %v99
    %181 = vmatpush1.msra.mxu0 %v98
    %182 = vmatprep.subr.mxu0 %v103
    %183 = vmatpush1.msra.mxu0 %v102
    %184 = vmatprep.subr.mxu0 %v107
    %185 = vmatpush1.msra.mxu0 %v106
    %186 = vmatprep.subr.mxu0 %v111
    %187 = vmatpush1.msra.mxu0 %v110
    %188 = vmatprep.subr.mxu0 %v115
    %189 = vmatpush1.msra.mxu0 %v114
    %190 = vmatprep.subr.mxu0 %v119
    %191 = vmatpush1.msra.mxu0 %v118
    %192 = vmatprep.subr.mxu0 %v123
    %193 = vmatpush1.msra.mxu0 %v122
    %194 = vmatprep.subr.mxu0 %v127
    %195 = vmatpush1.msra.mxu0 %v126
    %196 = vmatprep.subr.mxu0 %v131
    %197 = vmatpush1.msra.mxu0 %v130
    %198 = vmatprep.subr.mxu0 %v135
    %199 = vmatpush1.msra.mxu0 %v134
    %200 = vmatprep.subr.mxu0 %v139
    %201 = vmatpush1.msra.mxu0 %v138
    %202 = vmatprep.subr.mxu0 %v143
    %203 = vmatpush1.msra.mxu0 %v142
    %204 = vmatprep.subr.mxu0 %v147
    %205 = vmatpush1.msra.mxu0 %v146
    %206 = vmatprep.subr.mxu0 %v151
    %207 = vmatpush1.msra.mxu0 %v150
    %208 = vmatprep.subr.mxu0 0.0
    %209 = vmatpush1.msra.mxu0 0.0
    %210 = vmatprep.subr.mxu0 0.0
    %211 = vmatpush1.msra.mxu0 0.0
    %212 = vmatprep.subr.mxu0 0.0
    %213 = vmatpush1.msra.mxu0 0.0
    %214 = vmatprep.subr.mxu0 0.0
    %215 = vmatpush1.msra.mxu0 0.0
    %216 = vmatprep.subr.mxu0 0.0
    %217 = vmatpush1.msra.mxu0 0.0
    %218 = vmatprep.subr.mxu0 0.0
    %219 = vmatpush1.msra.mxu0 0.0
    %220 = vmatprep.subr.mxu0 0.0
    %221 = vmatpush1.msra.mxu0 0.0
    %222 = vmatprep.subr.mxu0 0.0
    %223 = vmatpush1.msra.mxu0 0.0
    %224 = vmatprep.subr.mxu0 0.0
    %225 = vmatpush1.msra.mxu0 0.0
    %226 = vmatprep.subr.mxu0 0.0
    %227 = vmatpush1.msra.mxu0 0.0
    %228 = vmatprep.subr.mxu0 0.0
    %229 = vmatpush1.msra.mxu0 0.0
    %230 = vmatprep.subr.mxu0 0.0
    %231 = vmatpush1.msra.mxu0 0.0
    %232 = vmatprep.subr.mxu0 0.0
    %233 = vmatpush1.msra.mxu0 0.0
    %234 = vmatprep.subr.mxu0 0.0
    %235 = vmatpush1.msra.mxu0 0.0
    %236 = vmatprep.subr.mxu0 0.0
    %237 = vmatpush1.msra.mxu0 0.0
    %238 = vmatprep.subr.mxu0 0.0
    %239 = vmatpush1.msra.mxu0 0.0
    %240 = vmatprep.mubr.f32.mxu0 0.0
    %241 = vmatmul.mubr.f32.gmra.mrb[0].mxu0 %v82
    %v242 = vpop.f32.mrb[0].mxu0
    %v243 = vadd.f32 %v159, %v242
    %v244 = vpop.f32.mrb[0].mxu0
    %v245 = vadd.f32 %v163, %v244
    %246 = vmatprep.mubr.f32.mxu0 0.0
    %247 = vmatmul.mubr.f32.gmra.mrb[0].mxu0 %v83
    %v248 = vpop.f32.mrb[0].mxu0
    %v249 = vadd.f32 %v159, %v248
    %v250 = vpop.f32.mrb[0].mxu0
    %v251 = vadd.f32 %v163, %v250
    %252 = vmatprep.mubr.f32.mxu0 0.0
    %253 = vmatmul.mubr.f32.gmra.mrb[0].mxu0 %v84
    %v254 = vpop.f32.mrb[0].mxu0
    %v255 = vadd.f32 %v159, %v254
    %v256 = vpop.f32.mrb[0].mxu0
    %v257 = vadd.f32 %v163, %v256
    %258 = vmatprep.mubr.f32.mxu0 0.0
    %259 = vmatmul.mubr.f32.gmra.mrb[0].mxu0 %v85
    %v260 = vpop.f32.mrb[0].mxu0
    %v261 = vadd.f32 %v159, %v260
    %v262 = vpop.f32.mrb[0].mxu0
    %v263 = vadd.f32 %v163, %v262
    %264 = vmatprep.mubr.f32.mxu0 0.0
    %265 = vmatmul.mubr.f32.gmra.mrb[0].mxu0 %v86
    %v266 = vpop.f32.mrb[0].mxu0
    %v267 = vadd.f32 %v159, %v266
    %v268 = vpop.f32.mrb[0].mxu0
    %v269 = vadd.f32 %v163, %v268
    %270 = vmatprep.mubr.f32.mxu0 0.0
    %271 = vmatmul.mubr.f32.gmra.mrb[0].mxu0 %v87
    %v272 = vpop.f32.mrb[0].mxu0
    %v273 = vadd.f32 %v159, %v272
    %v274 = vpop.f32.mrb[0].mxu0
    %v275 = vadd.f32 %v163, %v274
    %276 = vmatprep.mubr.f32.mxu0 0.0
    %277 = vmatmul.mubr.f32.gmra.mrb[0].mxu0 %v88
    %v278 = vpop.f32.mrb[0].mxu0
    %v279 = vadd.f32 %v159, %v278
    %v280 = vpop.f32.mrb[0].mxu0
    %v281 = vadd.f32 %v163, %v280
    %282 = vmatprep.mubr.f32.mxu0 0.0
    %283 = vmatmul.mubr.f32.gmra.mrb[0].mxu0 %v89
    %v284 = vpop.f32.mrb[0].mxu0
    %v285 = vadd.f32 %v159, %v284
    %v286 = vpop.f32.mrb[0].mxu0
    %v287 = vadd.f32 %v163, %v286
    %288 = vdwg.mxu0
    %289 = vmatprep.subr.mxu0 %v93
    %290 = vmatpush1.msra.mxu0 %v92
    %291 = vmatprep.subr.mxu0 %v97
    %292 = vmatpush1.msra.mxu0 %v96
    %293 = vmatprep.subr.mxu0 %v101
    %294 = vmatpush1.msra.mxu0 %v100
    %295 = vmatprep.subr.mxu0 %v105
    %296 = vmatpush1.msra.mxu0 %v104
    %297 = vmatprep.subr.mxu0 %v109
    %298 = vmatpush1.msra.mxu0 %v108
    %299 = vmatprep.subr.mxu0 %v113
    %300 = vmatpush1.msra.mxu0 %v112
    %301 = vmatprep.subr.mxu0 %v117
    %302 = vmatpush1.msra.mxu0 %v116
    %303 = vmatprep.subr.mxu0 %v121
    %304 = vmatpush1.msra.mxu0 %v120
    %305 = vmatprep.subr.mxu0 %v125
    %306 = vmatpush1.msra.mxu0 %v124
    %307 = vmatprep.subr.mxu0 %v129
    %308 = vmatpush1.msra.mxu0 %v128
    %309 = vmatprep.subr.mxu0 %v133
    %310 = vmatpush1.msra.mxu0 %v132
    %311 = vmatprep.subr.mxu0 %v137
    %312 = vmatpush1.msra.mxu0 %v136
    %313 = vmatprep.subr.mxu0 %v141
    %314 = vmatpush1.msra.mxu0 %v140
    %315 = vmatprep.subr.mxu0 %v145
    %316 = vmatpush1.msra.mxu0 %v144
    %317 = vmatprep.subr.mxu0 %v149
    %318 = vmatpush1.msra.mxu0 %v148
    %319 = vmatprep.subr.mxu0 %v153
    %320 = vmatpush1.msra.mxu0 %v152
    %321 = vmatprep.subr.mxu0 0.0
    %322 = vmatpush1.msra.mxu0 0.0
    %323 = vmatprep.subr.mxu0 0.0
    %324 = vmatpush1.msra.mxu0 0.0
    %325 = vmatprep.subr.mxu0 0.0
    %326 = vmatpush1.msra.mxu0 0.0
    %327 = vmatprep.subr.mxu0 0.0
    %328 = vmatpush1.msra.mxu0 0.0
    %329 = vmatprep.subr.mxu0 0.0
    %330 = vmatpush1.msra.mxu0 0.0
    %331 = vmatprep.subr.mxu0 0.0
    %332 = vmatpush1.msra.mxu0 0.0
    %333 = vmatprep.subr.mxu0 0.0
    %334 = vmatpush1.msra.mxu0 0.0
    %335 = vmatprep.subr.mxu0 0.0
    %336 = vmatpush1.msra.mxu0 0.0
    %337 = vmatprep.subr.mxu0 0.0
    %338 = vmatpush1.msra.mxu0 0.0
    %339 = vmatprep.subr.mxu0 0.0
    %340 = vmatpush1.msra.mxu0 0.0
    %341 = vmatprep.subr.mxu0 0.0
    %342 = vmatpush1.msra.mxu0 0.0
    %343 = vmatprep.subr.mxu0 0.0
    %344 = vmatpush1.msra.mxu0 0.0
    %345 = vmatprep.subr.mxu0 0.0
    %346 = vmatpush1.msra.mxu0 0.0
    %347 = vmatprep.subr.mxu0 0.0
    %348 = vmatpush1.msra.mxu0 0.0
    %349 = vmatprep.subr.mxu0 0.0
    %350 = vmatpush1.msra.mxu0 0.0
    %351 = vmatprep.subr.mxu0 0.0
    %352 = vmatpush1.msra.mxu0 0.0
    %353 = vmatprep.mubr.f32.mxu0 0.0
    %354 = vmatmul.mubr.f32.gmra.mrb[0].mxu0 %v82
    %v355 = vpop.f32.mrb[0].mxu0
    %v356 = vadd.f32 %v167, %v355
    %v357 = vpop.f32.mrb[0].mxu0
    %v358 = vadd.f32 %v171, %v357
    %359 = vmatprep.mubr.f32.mxu0 0.0
    %360 = vmatmul.mubr.f32.gmra.mrb[0].mxu0 %v83
    %v361 = vpop.f32.mrb[0].mxu0
    %v362 = vadd.f32 %v167, %v361
    %v363 = vpop.f32.mrb[0].mxu0
    %v364 = vadd.f32 %v171, %v363
    %365 = vmatprep.mubr.f32.mxu0 0.0
    %366 = vmatmul.mubr.f32.gmra.mrb[0].mxu0 %v84
    %v367 = vpop.f32.mrb[0].mxu0
    %v368 = vadd.f32 %v167, %v367
    %v369 = vpop.f32.mrb[0].mxu0
    %v370 = vadd.f32 %v171, %v369
    %371 = vmatprep.mubr.f32.mxu0 0.0
    %372 = vmatmul.mubr.f32.gmra.mrb[0].mxu0 %v85
    %v373 = vpop.f32.mrb[0].mxu0
    %v374 = vadd.f32 %v167, %v373
    %v375 = vpop.f32.mrb[0].mxu0
    %v376 = vadd.f32 %v171, %v375
    %377 = vmatprep.mubr.f32.mxu0 0.0
    %378 = vmatmul.mubr.f32.gmra.mrb[0].mxu0 %v86
    %v379 = vpop.f32.mrb[0].mxu0
    %v380 = vadd.f32 %v167, %v379
    %v381 = vpop.f32.mrb[0].mxu0
    %v382 = vadd.f32 %v171, %v381
    %383 = vmatprep.mubr.f32.mxu0 0.0
    %384 = vmatmul.mubr.f32.gmra.mrb[0].mxu0 %v87
    %v385 = vpop.f32.mrb[0].mxu0
    %v386 = vadd.f32 %v167, %v385
    %v387 = vpop.f32.mrb[0].mxu0
    %v388 = vadd.f32 %v171, %v387
    %389 = vmatprep.mubr.f32.mxu0 0.0
    %390 = vmatmul.mubr.f32.gmra.mrb[0].mxu0 %v88
    %v391 = vpop.f32.mrb[0].mxu0
    %v392 = vadd.f32 %v167, %v391
    %v393 = vpop.f32.mrb[0].mxu0
    %v394 = vadd.f32 %v171, %v393
    %395 = vmatprep.mubr.f32.mxu0 0.0
    %396 = vmatmul.mubr.f32.gmra.mrb[0].mxu0 %v89
    %v397 = vpop.f32.mrb[0].mxu0
    %v398 = vadd.f32 %v167, %v397
    %v399 = vpop.f32.mrb[0].mxu0
    %v400 = vadd.f32 %v171, %v399
    %401 = vdwg.mxu0
    %402 = vst [vmem:[#allocation5] sm:$0xff] %v243
    %403 = vst [vmem:[#allocation5 + $0x8] sm:$0xff] %v245
    %404 = vst [vmem:[#allocation5 + $0x10] sm:$0xff] %v356
    %405 = vst [vmem:[#allocation5 + $0x18] sm:$0xff] %v358
    %406 = vst [vmem:[#allocation5 + $0x20] sm:$0xff] %v249
    %407 = vst [vmem:[#allocation5 + $0x28] sm:$0xff] %v251
    %408 = vst [vmem:[#allocation5 + $0x30] sm:$0xff] %v362
    %409 = vst [vmem:[#allocation5 + $0x38] sm:$0xff] %v364
    %410 = vst [vmem:[#allocation5 + $0x40] sm:$0xff] %v255
    %411 = vst [vmem:[#allocation5 + $0x48] sm:$0xff] %v257
    %412 = vst [vmem:[#allocation5 + $0x50] sm:$0xff] %v368
    %413 = vst [vmem:[#allocation5 + $0x58] sm:$0xff] %v370
    %414 = vst [vmem:[#allocation5 + $0x60] sm:$0xff] %v261
    %415 = vst [vmem:[#allocation5 + $0x68] sm:$0xff] %v263
    %416 = vst [vmem:[#allocation5 + $0x70] sm:$0xff] %v374
    %417 = vst [vmem:[#allocation5 + $0x78] sm:$0xff] %v376
    %418 = vst [vmem:[#allocation5 + $0x80] sm:$0xff] %v267
    %419 = vst [vmem:[#allocation5 + $0x88] sm:$0xff] %v269
    %420 = vst [vmem:[#allocation5 + $0x90] sm:$0xff] %v380
    %421 = vst [vmem:[#allocation5 + $0x98] sm:$0xff] %v382
    %422 = vst [vmem:[#allocation5 + $0xa0] sm:$0xff] %v273
    %423 = vst [vmem:[#allocation5 + $0xa8] sm:$0xff] %v275
    %424 = vst [vmem:[#allocation5 + $0xb0] sm:$0xff] %v386
    %425 = vst [vmem:[#allocation5 + $0xb8] sm:$0xff] %v388
    %426 = vst [vmem:[#allocation5 + $0xc0] sm:$0xff] %v279
    %427 = vst [vmem:[#allocation5 + $0xc8] sm:$0xff] %v281
    %428 = vst [vmem:[#allocation5 + $0xd0] sm:$0xff] %v392
    %429 = vst [vmem:[#allocation5 + $0xd8] sm:$0xff] %v394
    %430 = vst [vmem:[#allocation5 + $0xe0] sm:$0xff] %v285
    %431 = vst [vmem:[#allocation5 + $0xe8] sm:$0xff] %v287
    %432 = vst [vmem:[#allocation5 + $0xf0] sm:$0xff] %v398
    %433 = vst [vmem:[#allocation5 + $0xf8] sm:$0xff] %v400
    %v434 = vld [vmem:[#allocation3] sm:$0xff]
    %v435 = vld [vmem:[#allocation3 + $0x8] sm:$0xff]
    %v436 = vld [vmem:[#allocation3 + $0x10] sm:$0xff]
    %v437 = vld [vmem:[#allocation3 + $0x18] sm:$0xff]
    %v438 = vld [vmem:[#allocation3 + $0x20] sm:$0xff]
    %v439 = vld [vmem:[#allocation3 + $0x28] sm:$0xff]
    %v440 = vld [vmem:[#allocation3 + $0x30] sm:$0xff]
    %v441 = vld [vmem:[#allocation3 + $0x38] sm:$0xff]
    %v442 = vld [vmem:[#allocation3 + $0x40] sm:$0xff]
    %v443 = vld [vmem:[#allocation3 + $0x48] sm:$0xff]
    %v444 = vld [vmem:[#allocation3 + $0x50] sm:$0xff]
    %v445 = vld [vmem:[#allocation3 + $0x58] sm:$0xff]
    %v446 = vld [vmem:[#allocation3 + $0x60] sm:$0xff]
    %v447 = vld [vmem:[#allocation3 + $0x68] sm:$0xff]
    %v448 = vld [vmem:[#allocation3 + $0x70] sm:$0xff]
    %v449 = vld [vmem:[#allocation3 + $0x78] sm:$0xff]
    %v450 = vld [vmem:[#allocation3 + $0x80] sm:$0xff]
    %v451 = vld [vmem:[#allocation3 + $0x88] sm:$0xff]
    %v452 = vld [vmem:[#allocation3 + $0x90] sm:$0xff]
    %v453 = vld [vmem:[#allocation3 + $0x98] sm:$0xff]
    %v454 = vld [vmem:[#allocation3 + $0xa0] sm:$0xff]
    %v455 = vld [vmem:[#allocation3 + $0xa8] sm:$0xff]
    %v456 = vld [vmem:[#allocation3 + $0xb0] sm:$0xff]
    %v457 = vld [vmem:[#allocation3 + $0xb8] sm:$0xff]
    %v458 = vld [vmem:[#allocation3 + $0xc0] sm:$0xff]
    %v459 = vld [vmem:[#allocation3 + $0xc8] sm:$0xff]
    %v460 = vld [vmem:[#allocation3 + $0xd0] sm:$0xff]
    %v461 = vld [vmem:[#allocation3 + $0xd8] sm:$0xff]
    %v462 = vld [vmem:[#allocation3 + $0xe0] sm:$0xff]
    %v463 = vld [vmem:[#allocation3 + $0xe8] sm:$0xff]
    %v464 = vld [vmem:[#allocation3 + $0xf0] sm:$0xff]
    %v465 = vld [vmem:[#allocation3 + $0xf8] sm:$0xff]
    %v466 = vld [vmem:[#allocation3 + $0x100] sm:$0xff]
    %v467 = vld [vmem:[#allocation3 + $0x108] sm:$0xff]
    %v468 = vld [vmem:[#allocation3 + $0x110] sm:$0xff]
    %v469 = vld [vmem:[#allocation3 + $0x118] sm:$0xff]
    %v470 = vld [vmem:[#allocation3 + $0x120] sm:$0xff]
    %v471 = vld [vmem:[#allocation3 + $0x128] sm:$0xff]
    %v472 = vld [vmem:[#allocation3 + $0x130] sm:$0xff]
    %v473 = vld [vmem:[#allocation3 + $0x138] sm:$0xff]
    %v474 = vld [vmem:[#allocation3 + $0x140] sm:$0xff]
    %v475 = vld [vmem:[#allocation3 + $0x148] sm:$0xff]
    %v476 = vld [vmem:[#allocation3 + $0x150] sm:$0xff]
    %v477 = vld [vmem:[#allocation3 + $0x158] sm:$0xff]
    %v478 = vld [vmem:[#allocation3 + $0x160] sm:$0xff]
    %v479 = vld [vmem:[#allocation3 + $0x168] sm:$0xff]
    %v480 = vld [vmem:[#allocation3 + $0x170] sm:$0xff]
    %v481 = vld [vmem:[#allocation3 + $0x178] sm:$0xff]
    %v482 = vld [vmem:[#allocation3 + $0x180] sm:$0xff]
    %v483 = vld [vmem:[#allocation3 + $0x188] sm:$0xff]
    %v484 = vld [vmem:[#allocation3 + $0x190] sm:$0xff]
    %v485 = vld [vmem:[#allocation3 + $0x198] sm:$0xff]
    %v486 = vld [vmem:[#allocation3 + $0x1a0] sm:$0xff]
    %v487 = vld [vmem:[#allocation3 + $0x1a8] sm:$0xff]
    %v488 = vld [vmem:[#allocation3 + $0x1b0] sm:$0xff]
    %v489 = vld [vmem:[#allocation3 + $0x1b8] sm:$0xff]
    %v490 = vld [vmem:[#allocation3 + $0x1c0] sm:$0xff]
    %v491 = vld [vmem:[#allocation3 + $0x1c8] sm:$0xff]
    %v492 = vld [vmem:[#allocation3 + $0x1d0] sm:$0xff]
    %v493 = vld [vmem:[#allocation3 + $0x1d8] sm:$0xff]
    %v494 = vld [vmem:[#allocation3 + $0x1e0] sm:$0xff]
    %v495 = vld [vmem:[#allocation3 + $0x1e8] sm:$0xff]
    %v496 = vld [vmem:[#allocation3 + $0x1f0] sm:$0xff]
    %v497 = vld [vmem:[#allocation3 + $0x1f8] sm:$0xff]
    %v498 = vld [vmem:[#allocation7] sm:$0xff]
    %v499 = vld [vmem:[#allocation8] sm:$0xff]
    %v500 = vld [vmem:[#allocation5] sm:$0xff]
    %v501 = vld [vmem:[#allocation5 + $0x8] sm:$0xff]
    %v502 = vld [vmem:[#allocation5 + $0x10] sm:$0xff]
    %v503 = vld [vmem:[#allocation5 + $0x18] sm:$0xff]
    %504 = vmatprep.subr.mxu0 %v435
    %505 = vmatpush1.msra.mxu0 %v434
    %506 = vmatprep.subr.mxu0 %v439
    %507 = vmatpush1.msra.mxu0 %v438
    %508 = vmatprep.subr.mxu0 %v443
    %509 = vmatpush1.msra.mxu0 %v442
    %510 = vmatprep.subr.mxu0 %v447
    %511 = vmatpush1.msra.mxu0 %v446
    %512 = vmatprep.subr.mxu0 %v451
    %513 = vmatpush1.msra.mxu0 %v450
    %514 = vmatprep.subr.mxu0 %v455
    %515 = vmatpush1.msra.mxu0 %v454
    %516 = vmatprep.subr.mxu0 %v459
    %517 = vmatpush1.msra.mxu0 %v458
    %518 = vmatprep.subr.mxu0 %v463
    %519 = vmatpush1.msra.mxu0 %v462
    %520 = vmatprep.subr.mxu0 %v467
    %521 = vmatpush1.msra.mxu0 %v466
    %522 = vmatprep.subr.mxu0 %v471
    %523 = vmatpush1.msra.mxu0 %v470
    %524 = vmatprep.subr.mxu0 %v475
    %525 = vmatpush1.msra.mxu0 %v474
    %526 = vmatprep.subr.mxu0 %v479
    %527 = vmatpush1.msra.mxu0 %v478
    %528 = vmatprep.subr.mxu0 %v483
    %529 = vmatpush1.msra.mxu0 %v482
    %530 = vmatprep.subr.mxu0 %v487
    %531 = vmatpush1.msra.mxu0 %v486
    %532 = vmatprep.subr.mxu0 %v491
    %533 = vmatpush1.msra.mxu0 %v490
    %534 = vmatprep.subr.mxu0 %v495
    %535 = vmatpush1.msra.mxu0 %v494
    %536 = vmatprep.subr.mxu0 0.0
    %537 = vmatpush1.msra.mxu0 0.0
    %538 = vmatprep.subr.mxu0 0.0
    %539 = vmatpush1.msra.mxu0 0.0
    %540 = vmatprep.subr.mxu0 0.0
    %541 = vmatpush1.msra.mxu0 0.0
    %542 = vmatprep.subr.mxu0 0.0
    %543 = vmatpush1.msra.mxu0 0.0
    %544 = vmatprep.subr.mxu0 0.0
    %545 = vmatpush1.msra.mxu0 0.0
    %546 = vmatprep.subr.mxu0 0.0
    %547 = vmatpush1.msra.mxu0 0.0
    %548 = vmatprep.subr.mxu0 0.0
    %549 = vmatpush1.msra.mxu0 0.0
    %550 = vmatprep.subr.mxu0 0.0
    %551 = vmatpush1.msra.mxu0 0.0
    %552 = vmatprep.subr.mxu0 0.0
    %553 = vmatpush1.msra.mxu0 0.0
    %554 = vmatprep.subr.mxu0 0.0
    %555 = vmatpush1.msra.mxu0 0.0
    %556 = vmatprep.subr.mxu0 0.0
    %557 = vmatpush1.msra.mxu0 0.0
    %558 = vmatprep.subr.mxu0 0.0
    %559 = vmatpush1.msra.mxu0 0.0
    %560 = vmatprep.subr.mxu0 0.0
    %561 = vmatpush1.msra.mxu0 0.0
    %562 = vmatprep.subr.mxu0 0.0
    %563 = vmatpush1.msra.mxu0 0.0
    %564 = vmatprep.subr.mxu0 0.0
    %565 = vmatpush1.msra.mxu0 0.0
    %566 = vmatprep.subr.mxu0 0.0
    %567 = vmatpush1.msra.mxu0 0.0
    %568 = vmatprep.mubr.f32.mxu0 0.0
    %569 = vmatmul.mubr.f32.gmra.mrb[0].mxu0 %v498
    %v570 = vpop.f32.mrb[0].mxu0
    %v571 = vadd.f32 0.0, %v570
    %v572 = vpop.f32.mrb[0].mxu0
    %v573 = vadd.f32 0.0, %v572
    %574 = vdwg.mxu0
    %575 = vmatprep.subr.mxu0 %v437
    %576 = vmatpush1.msra.mxu0 %v436
    %577 = vmatprep.subr.mxu0 %v441
    %578 = vmatpush1.msra.mxu0 %v440
    %579 = vmatprep.subr.mxu0 %v445
    %580 = vmatpush1.msra.mxu0 %v444
    %581 = vmatprep.subr.mxu0 %v449
    %582 = vmatpush1.msra.mxu0 %v448
    %583 = vmatprep.subr.mxu0 %v453
    %584 = vmatpush1.msra.mxu0 %v452
    %585 = vmatprep.subr.mxu0 %v457
    %586 = vmatpush1.msra.mxu0 %v456
    %587 = vmatprep.subr.mxu0 %v461
    %588 = vmatpush1.msra.mxu0 %v460
    %589 = vmatprep.subr.mxu0 %v465
    %590 = vmatpush1.msra.mxu0 %v464
    %591 = vmatprep.subr.mxu0 %v469
    %592 = vmatpush1.msra.mxu0 %v468
    %593 = vmatprep.subr.mxu0 %v473
    %594 = vmatpush1.msra.mxu0 %v472
    %595 = vmatprep.subr.mxu0 %v477
    %596 = vmatpush1.msra.mxu0 %v476
    %597 = vmatprep.subr.mxu0 %v481
    %598 = vmatpush1.msra.mxu0 %v480
    %599 = vmatprep.subr.mxu0 %v485
    %600 = vmatpush1.msra.mxu0 %v484
    %601 = vmatprep.subr.mxu0 %v489
    %602 = vmatpush1.msra.mxu0 %v488
    %603 = vmatprep.subr.mxu0 %v493
    %604 = vmatpush1.msra.mxu0 %v492
    %605 = vmatprep.subr.mxu0 %v497
    %606 = vmatpush1.msra.mxu0 %v496
    %607 = vmatprep.subr.mxu0 0.0
    %608 = vmatpush1.msra.mxu0 0.0
    %609 = vmatprep.subr.mxu0 0.0
    %610 = vmatpush1.msra.mxu0 0.0
    %611 = vmatprep.subr.mxu0 0.0
    %612 = vmatpush1.msra.mxu0 0.0
    %613 = vmatprep.subr.mxu0 0.0
    %614 = vmatpush1.msra.mxu0 0.0
    %615 = vmatprep.subr.mxu0 0.0
    %616 = vmatpush1.msra.mxu0 0.0
    %617 = vmatprep.subr.mxu0 0.0
    %618 = vmatpush1.msra.mxu0 0.0
    %619 = vmatprep.subr.mxu0 0.0
    %620 = vmatpush1.msra.mxu0 0.0
    %621 = vmatprep.subr.mxu0 0.0
    %622 = vmatpush1.msra.mxu0 0.0
    %623 = vmatprep.subr.mxu0 0.0
    %624 = vmatpush1.msra.mxu0 0.0
    %625 = vmatprep.subr.mxu0 0.0
    %626 = vmatpush1.msra.mxu0 0.0
    %627 = vmatprep.subr.mxu0 0.0
    %628 = vmatpush1.msra.mxu0 0.0
    %629 = vmatprep.subr.mxu0 0.0
    %630 = vmatpush1.msra.mxu0 0.0
    %631 = vmatprep.subr.mxu0 0.0
    %632 = vmatpush1.msra.mxu0 0.0
    %633 = vmatprep.subr.mxu0 0.0
    %634 = vmatpush1.msra.mxu0 0.0
    %635 = vmatprep.subr.mxu0 0.0
    %636 = vmatpush1.msra.mxu0 0.0
    %637 = vmatprep.subr.mxu0 0.0
    %638 = vmatpush1.msra.mxu0 0.0
    %639 = vmatprep.mubr.f32.mxu0 0.0
    %640 = vmatmul.mubr.f32.gmra.mrb[0].mxu0 %v498
    %v641 = vpop.f32.mrb[0].mxu0
    %v642 = vadd.f32 0.0, %v641
    %v643 = vpop.f32.mrb[0].mxu0
    %v644 = vadd.f32 0.0, %v643
    %645 = vdwg.mxu0
    %v646 = vadd.f32 %v500, %v571
    %v647 = vadd.f32 %v501, %v573
    %v648 = vadd.f32 %v502, %v642
    %v649 = vadd.f32 %v503, %v644
    %v650 = vmul.f32 %v646, 0.5
    %v651 = vtanh.pop %v650
    %v652 = vmul.f32 %v651, 0.5
    %v653 = vadd.f32 %v652, 0.5
    %v654 = vmul.f32 %v647, 0.5
    %v655 = vtanh.pop %v654
    %v656 = vmul.f32 %v655, 0.5
    %v657 = vadd.f32 %v656, 0.5
    %v658 = vtanh.pop %v648
    %v659 = vmul.f32 %v649, 0.5
    %v660 = vtanh.pop %v659
    %v661 = vmul.f32 %v660, 0.5
    %v662 = vadd.f32 %v661, 0.5
    %v663 = vmul.f32 %v657, %v499
    %v664 = vmul.f32 %v653, %v658
    %v665 = vadd.f32 %v663, %v664
    %v666 = vtanh.pop %v665
    %v667 = vmul.f32 %v662, %v666
    %668 = vst [vmem:[#allocation6] sm:$0xff] %v667
    %s669 = scalar_lea.vmem [#allocation5], 32
    %v670 = vld [vmem:[%s669] sm:$0xff]
    %v671 = vld [vmem:[%s669 + $0x8] sm:$0xff]
    %v672 = vld [vmem:[%s669 + $0x10] sm:$0xff]
    %v673 = vld [vmem:[%s669 + $0x18] sm:$0xff]
    %674 = vmatprep.subr.mxu0 %v435
    %675 = vmatpush1.msra.mxu0 %v434
    %676 = vmatprep.subr.mxu0 %v439
    %677 = vmatpush1.msra.mxu0 %v438
    %678 = vmatprep.subr.mxu0 %v443
    %679 = vmatpush1.msra.mxu0 %v442
    %680 = vmatprep.subr.mxu0 %v447
    %681 = vmatpush1.msra.mxu0 %v446
    %682 = vmatprep.subr.mxu0 %v451
    %683 = vmatpush1.msra.mxu0 %v450
    %684 = vmatprep.subr.mxu0 %v455
    %685 = vmatpush1.msra.mxu0 %v454
    %686 = vmatprep.subr.mxu0 %v459
    %687 = vmatpush1.msra.mxu0 %v458
    %688 = vmatprep.subr.mxu0 %v463
    %689 = vmatpush1.msra.mxu0 %v462
    %690 = vmatprep.subr.mxu0 %v467
    %691 = vmatpush1.msra.mxu0 %v466
    %692 = vmatprep.subr.mxu0 %v471
    %693 = vmatpush1.msra.mxu0 %v470
    %694 = vmatprep.subr.mxu0 %v475
    %695 = vmatpush1.msra.mxu0 %v474
    %696 = vmatprep.subr.mxu0 %v479
    %697 = vmatpush1.msra.mxu0 %v478
    %698 = vmatprep.subr.mxu0 %v483
    %699 = vmatpush1.msra.mxu0 %v482
    %700 = vmatprep.subr.mxu0 %v487
    %701 = vmatpush1.msra.mxu0 %v486
    %702 = vmatprep.subr.mxu0 %v491
    %703 = vmatpush1.msra.mxu0 %v490
    %704 = vmatprep.subr.mxu0 %v495
    %705 = vmatpush1.msra.mxu0 %v494
    %706 = vmatprep.subr.mxu0 0.0
    %707 = vmatpush1.msra.mxu0 0.0
    %708 = vmatprep.subr.mxu0 0.0
    %709 = vmatpush1.msra.mxu0 0.0
    %710 = vmatprep.subr.mxu0 0.0
    %711 = vmatpush1.msra.mxu0 0.0
    %712 = vmatprep.subr.mxu0 0.0
    %713 = vmatpush1.msra.mxu0 0.0
    %714 = vmatprep.subr.mxu0 0.0
    %715 = vmatpush1.msra.mxu0 0.0
    %716 = vmatprep.subr.mxu0 0.0
    %717 = vmatpush1.msra.mxu0 0.0
    %718 = vmatprep.subr.mxu0 0.0
    %719 = vmatpush1.msra.mxu0 0.0
    %720 = vmatprep.subr.mxu0 0.0
    %721 = vmatpush1.msra.mxu0 0.0
    %722 = vmatprep.subr.mxu0 0.0
    %723 = vmatpush1.msra.mxu0 0.0
    %724 = vmatprep.subr.mxu0 0.0
    %725 = vmatpush1.msra.mxu0 0.0
    %726 = vmatprep.subr.mxu0 0.0
    %727 = vmatpush1.msra.mxu0 0.0
    %728 = vmatprep.subr.mxu0 0.0
    %729 = vmatpush1.msra.mxu0 0.0
    %730 = vmatprep.subr.mxu0 0.0
    %731 = vmatpush1.msra.mxu0 0.0
    %732 = vmatprep.subr.mxu0 0.0
    %733 = vmatpush1.msra.mxu0 0.0
    %734 = vmatprep.subr.mxu0 0.0
    %735 = vmatpush1.msra.mxu0 0.0
    %736 = vmatprep.subr.mxu0 0.0
    %737 = vmatpush1.msra.mxu0 0.0
    %738 = vmatprep.mubr.f32.mxu0 0.0
    %739 = vmatmul.mubr.f32.gmra.mrb[0].mxu0 %v667
    %v740 = vpop.f32.mrb[0].mxu0
    %v741 = vadd.f32 0.0, %v740
    %v742 = vpop.f32.mrb[0].mxu0
    %v743 = vadd.f32 0.0, %v742
    %744 = vdwg.mxu0
    %745 = vmatprep.subr.mxu0 %v437
    %746 = vmatpush1.msra.mxu0 %v436
    %747 = vmatprep.subr.mxu0 %v441
    %748 = vmatpush1.msra.mxu0 %v440
    %749 = vmatprep.subr.mxu0 %v445
    %750 = vmatpush1.msra.mxu0 %v444
    %751 = vmatprep.subr.mxu0 %v449
    %752 = vmatpush1.msra.mxu0 %v448
    %753 = vmatprep.subr.mxu0 %v453
    %754 = vmatpush1.msra.mxu0 %v452
    %755 = vmatprep.subr.mxu0 %v457
    %756 = vmatpush1.msra.mxu0 %v456
    %757 = vmatprep.subr.mxu0 %v461
    %758 = vmatpush1.msra.mxu0 %v460
    %759 = vmatprep.subr.mxu0 %v465
    %760 = vmatpush1.msra.mxu0 %v464
    %761 = vmatprep.subr.mxu0 %v469
    %762 = vmatpush1.msra.mxu0 %v468
    %763 = vmatprep.subr.mxu0 %v473
    %764 = vmatpush1.msra.mxu0 %v472
    %765 = vmatprep.subr.mxu0 %v477
    %766 = vmatpush1.msra.mxu0 %v476
    %767 = vmatprep.subr.mxu0 %v481
    %768 = vmatpush1.msra.mxu0 %v480
    %769 = vmatprep.subr.mxu0 %v485
    %770 = vmatpush1.msra.mxu0 %v484
    %771 = vmatprep.subr.mxu0 %v489
    %772 = vmatpush1.msra.mxu0 %v488
    %773 = vmatprep.subr.mxu0 %v493
    %774 = vmatpush1.msra.mxu0 %v492
    %775 = vmatprep.subr.mxu0 %v497
    %776 = vmatpush1.msra.mxu0 %v496
    %777 = vmatprep.subr.mxu0 0.0
    %778 = vmatpush1.msra.mxu0 0.0
    %779 = vmatprep.subr.mxu0 0.0
    %780 = vmatpush1.msra.mxu0 0.0
    %781 = vmatprep.subr.mxu0 0.0
    %782 = vmatpush1.msra.mxu0 0.0
    %783 = vmatprep.subr.mxu0 0.0
    %784 = vmatpush1.msra.mxu0 0.0
    %785 = vmatprep.subr.mxu0 0.0
    %786 = vmatpush1.msra.mxu0 0.0
    %787 = vmatprep.subr.mxu0 0.0
    %788 = vmatpush1.msra.mxu0 0.0
    %789 = vmatprep.subr.mxu0 0.0
    %790 = vmatpush1.msra.mxu0 0.0
    %791 = vmatprep.subr.mxu0 0.0
    %792 = vmatpush1.msra.mxu0 0.0
    %793 = vmatprep.subr.mxu0 0.0
    %794 = vmatpush1.msra.mxu0 0.0
    %795 = vmatprep.subr.mxu0 0.0
    %796 = vmatpush1.msra.mxu0 0.0
    %797 = vmatprep.subr.mxu0 0.0
    %798 = vmatpush1.msra.mxu0 0.0
    %799 = vmatprep.subr.mxu0 0.0
    %800 = vmatpush1.msra.mxu0 0.0
    %801 = vmatprep.subr.mxu0 0.0
    %802 = vmatpush1.msra.mxu0 0.0
    %803 = vmatprep.subr.mxu0 0.0
    %804 = vmatpush1.msra.mxu0 0.0
    %805 = vmatprep.subr.mxu0 0.0
    %806 = vmatpush1.msra.mxu0 0.0
    %807 = vmatprep.subr.mxu0 0.0
    %808 = vmatpush1.msra.mxu0 0.0
    %809 = vmatprep.mubr.f32.mxu0 0.0
    %810 = vmatmul.mubr.f32.gmra.mrb[0].mxu0 %v667
    %v811 = vpop.f32.mrb[0].mxu0
    %v812 = vadd.f32 0.0, %v811
    %v813 = vpop.f32.mrb[0].mxu0
    %v814 = vadd.f32 0.0, %v813
    %815 = vdwg.mxu0
    %v816 = vadd.f32 %v670, %v741
    %v817 = vadd.f32 %v671, %v743
    %v818 = vadd.f32 %v672, %v812
    %v819 = vadd.f32 %v673, %v814
    %v820 = vmul.f32 %v816, 0.5
    %v821 = vtanh.pop %v820
    %v822 = vmul.f32 %v821, 0.5
    %v823 = vadd.f32 %v822, 0.5
    %v824 = vmul.f32 %v817, 0.5
    %v825 = vtanh.pop %v824
    %v826 = vmul.f32 %v825, 0.5
    %v827 = vadd.f32 %v826, 0.5
    %v828 = vtanh.pop %v818
    %v829 = vmul.f32 %v819, 0.5
    %v830 = vtanh.pop %v829
    %v831 = vmul.f32 %v830, 0.5
    %v832 = vadd.f32 %v831, 0.5
    %v833 = vmul.f32 %v827, %v665
    %v834 = vmul.f32 %v823, %v828
    %v835 = vadd.f32 %v833, %v834
    %v836 = vtanh.pop %v835
    %v837 = vmul.f32 %v832, %v836
    %s838 = scalar_lea.vmem [#allocation6], 8
    %839 = vst [vmem:[%s838] sm:$0xff] %v837
    %s840 = scalar_lea.vmem [#allocation5], 64
    %v841 = vld [vmem:[%s840] sm:$0xff]
    %v842 = vld [vmem:[%s840 + $0x8] sm:$0xff]
    %v843 = vld [vmem:[%s840 + $0x10] sm:$0xff]
    %v844 = vld [vmem:[%s840 + $0x18] sm:$0xff]
    %845 = vmatprep.subr.mxu0 %v435
    %846 = vmatpush1.msra.mxu0 %v434
    %847 = vmatprep.subr.mxu0 %v439
    %848 = vmatpush1.msra.mxu0 %v438
    %849 = vmatprep.subr.mxu0 %v443
    %850 = vmatpush1.msra.mxu0 %v442
    %851 = vmatprep.subr.mxu0 %v447
    %852 = vmatpush1.msra.mxu0 %v446
    %853 = vmatprep.subr.mxu0 %v451
    %854 = vmatpush1.msra.mxu0 %v450
    %855 = vmatprep.subr.mxu0 %v455
    %856 = vmatpush1.msra.mxu0 %v454
    %857 = vmatprep.subr.mxu0 %v459
    %858 = vmatpush1.msra.mxu0 %v458
    %859 = vmatprep.subr.mxu0 %v463
    %860 = vmatpush1.msra.mxu0 %v462
    %861 = vmatprep.subr.mxu0 %v467
    %862 = vmatpush1.msra.mxu0 %v466
    %863 = vmatprep.subr.mxu0 %v471
    %864 = vmatpush1.msra.mxu0 %v470
    %865 = vmatprep.subr.mxu0 %v475
    %866 = vmatpush1.msra.mxu0 %v474
    %867 = vmatprep.subr.mxu0 %v479
    %868 = vmatpush1.msra.mxu0 %v478
    %869 = vmatprep.subr.mxu0 %v483
    %870 = vmatpush1.msra.mxu0 %v482
    %871 = vmatprep.subr.mxu0 %v487
    %872 = vmatpush1.msra.mxu0 %v486
    %873 = vmatprep.subr.mxu0 %v491
    %874 = vmatpush1.msra.mxu0 %v490
    %875 = vmatprep.subr.mxu0 %v495
    %876 = vmatpush1.msra.mxu0 %v494
    %877 = vmatprep.subr.mxu0 0.0
    %878 = vmatpush1.msra.mxu0 0.0
    %879 = vmatprep.subr.mxu0 0.0
    %880 = vmatpush1.msra.mxu0 0.0
    %881 = vmatprep.subr.mxu0 0.0
    %882 = vmatpush1.msra.mxu0 0.0
    %883 = vmatprep.subr.mxu0 0.0
    %884 = vmatpush1.msra.mxu0 0.0
    %885 = vmatprep.subr.mxu0 0.0
    %886 = vmatpush1.msra.mxu0 0.0
    %887 = vmatprep.subr.mxu0 0.0
    %888 = vmatpush1.msra.mxu0 0.0
    %889 = vmatprep.subr.mxu0 0.0
    %890 = vmatpush1.msra.mxu0 0.0
    %891 = vmatprep.subr.mxu0 0.0
    %892 = vmatpush1.msra.mxu0 0.0
    %893 = vmatprep.subr.mxu0 0.0
    %894 = vmatpush1.msra.mxu0 0.0
    %895 = vmatprep.subr.mxu0 0.0
    %896 = vmatpush1.msra.mxu0 0.0
    %897 = vmatprep.subr.mxu0 0.0
    %898 = vmatpush1.msra.mxu0 0.0
    %899 = vmatprep.subr.mxu0 0.0
    %900 = vmatpush1.msra.mxu0 0.0
    %901 = vmatprep.subr.mxu0 0.0
    %902 = vmatpush1.msra.mxu0 0.0
    %903 = vmatprep.subr.mxu0 0.0
    %904 = vmatpush1.msra.mxu0 0.0
    %905 = vmatprep.subr.mxu0 0.0
    %906 = vmatpush1.msra.mxu0 0.0
    %907 = vmatprep.subr.mxu0 0.0
    %908 = vmatpush1.msra.mxu0 0.0
    %909 = vmatprep.mubr.f32.mxu0 0.0
    %910 = vmatmul.mubr.f32.gmra.mrb[0].mxu0 %v837
    %v911 = vpop.f32.mrb[0].mxu0
    %v912 = vadd.f32 0.0, %v911
    %v913 = vpop.f32.mrb[0].mxu0
    %v914 = vadd.f32 0.0, %v913
    %915 = vdwg.mxu0
    %916 = vmatprep.subr.mxu0 %v437
    %917 = vmatpush1.msra.mxu0 %v436
    %918 = vmatprep.subr.mxu0 %v441
    %919 = vmatpush1.msra.mxu0 %v440
    %920 = vmatprep.subr.mxu0 %v445
    %921 = vmatpush1.msra.mxu0 %v444
    %922 = vmatprep.subr.mxu0 %v449
    %923 = vmatpush1.msra.mxu0 %v448
    %924 = vmatprep.subr.mxu0 %v453
    %925 = vmatpush1.msra.mxu0 %v452
    %926 = vmatprep.subr.mxu0 %v457
    %927 = vmatpush1.msra.mxu0 %v456
    %928 = vmatprep.subr.mxu0 %v461
    %929 = vmatpush1.msra.mxu0 %v460
    %930 = vmatprep.subr.mxu0 %v465
    %931 = vmatpush1.msra.mxu0 %v464
    %932 = vmatprep.subr.mxu0 %v469
    %933 = vmatpush1.msra.mxu0 %v468
    %934 = vmatprep.subr.mxu0 %v473
    %935 = vmatpush1.msra.mxu0 %v472
    %936 = vmatprep.subr.mxu0 %v477
    %937 = vmatpush1.msra.mxu0 %v476
    %938 = vmatprep.subr.mxu0 %v481
    %939 = vmatpush1.msra.mxu0 %v480
    %940 = vmatprep.subr.mxu0 %v485
    %941 = vmatpush1.msra.mxu0 %v484
    %942 = vmatprep.subr.mxu0 %v489
    %943 = vmatpush1.msra.mxu0 %v488
    %944 = vmatprep.subr.mxu0 %v493
    %945 = vmatpush1.msra.mxu0 %v492
    %946 = vmatprep.subr.mxu0 %v497
    %947 = vmatpush1.msra.mxu0 %v496
    %948 = vmatprep.subr.mxu0 0.0
    %949 = vmatpush1.msra.mxu0 0.0
    %950 = vmatprep.subr.mxu0 0.0
    %951 = vmatpush1.msra.mxu0 0.0
    %952 = vmatprep.subr.mxu0 0.0
    %953 = vmatpush1.msra.mxu0 0.0
    %954 = vmatprep.subr.mxu0 0.0
    %955 = vmatpush1.msra.mxu0 0.0
    %956 = vmatprep.subr.mxu0 0.0
    %957 = vmatpush1.msra.mxu0 0.0
    %958 = vmatprep.subr.mxu0 0.0
    %959 = vmatpush1.msra.mxu0 0.0
    %960 = vmatprep.subr.mxu0 0.0
    %961 = vmatpush1.msra.mxu0 0.0
    %962 = vmatprep.subr.mxu0 0.0
    %963 = vmatpush1.msra.mxu0 0.0
    %964 = vmatprep.subr.mxu0 0.0
    %965 = vmatpush1.msra.mxu0 0.0
    %966 = vmatprep.subr.mxu0 0.0
    %967 = vmatpush1.msra.mxu0 0.0
    %968 = vmatprep.subr.mxu0 0.0
    %969 = vmatpush1.msra.mxu0 0.0
    %970 = vmatprep.subr.mxu0 0.0
    %971 = vmatpush1.msra.mxu0 0.0
    %972 = vmatprep.subr.mxu0 0.0
    %973 = vmatpush1.msra.mxu0 0.0
    %974 = vmatprep.subr.mxu0 0.0
    %975 = vmatpush1.msra.mxu0 0.0
    %976 = vmatprep.subr.mxu0 0.0
    %977 = vmatpush1.msra.mxu0 0.0
    %978 = vmatprep.subr.mxu0 0.0
    %979 = vmatpush1.msra.mxu0 0.0
    %980 = vmatprep.mubr.f32.mxu0 0.0
    %981 = vmatmul.mubr.f32.gmra.mrb[0].mxu0 %v837
    %v982 = vpop.f32.mrb[0].mxu0
    %v983 = vadd.f32 0.0, %v982
    %v984 = vpop.f32.mrb[0].mxu0
    %v985 = vadd.f32 0.0, %v984
    %986 = vdwg.mxu0
    %v987 = vadd.f32 %v841, %v912
    %v988 = vadd.f32 %v842, %v914
    %v989 = vadd.f32 %v843, %v983
    %v990 = vadd.f32 %v844, %v985
    %v991 = vmul.f32 %v987, 0.5
    %v992 = vtanh.pop %v991
    %v993 = vmul.f32 %v992, 0.5
    %v994 = vadd.f32 %v993, 0.5
    %v995 = vmul.f32 %v988, 0.5
    %v996 = vtanh.pop %v995
    %v997 = vmul.f32 %v996, 0.5
    %v998 = vadd.f32 %v997, 0.5
    %v999 = vtanh.pop %v989
    %v1000 = vmul.f32 %v990, 0.5
    %v1001 = vtanh.pop %v1000
    %v1002 = vmul.f32 %v1001, 0.5
    %v1003 = vadd.f32 %v1002, 0.5
    %v1004 = vmul.f32 %v998, %v835
    %v1005 = vmul.f32 %v994, %v999
    %v1006 = vadd.f32 %v1004, %v1005
    %v1007 = vtanh.pop %v1006
    %v1008 = vmul.f32 %v1003, %v1007
    %s1009 = scalar_lea.vmem [#allocation6], 16
    %1010 = vst [vmem:[%s1009] sm:$0xff] %v1008
    %s1011 = scalar_lea.vmem [#allocation5], 96
    %v1012 = vld [vmem:[%s1011] sm:$0xff]
    %v1013 = vld [vmem:[%s1011 + $0x8] sm:$0xff]
    %v1014 = vld [vmem:[%s1011 + $0x10] sm:$0xff]
    %v1015 = vld [vmem:[%s1011 + $0x18] sm:$0xff]
    %1016 = vmatprep.subr.mxu0 %v435
    %1017 = vmatpush1.msra.mxu0 %v434
    %1018 = vmatprep.subr.mxu0 %v439
    %1019 = vmatpush1.msra.mxu0 %v438
    %1020 = vmatprep.subr.mxu0 %v443
    %1021 = vmatpush1.msra.mxu0 %v442
    %1022 = vmatprep.subr.mxu0 %v447
    %1023 = vmatpush1.msra.mxu0 %v446
    %1024 = vmatprep.subr.mxu0 %v451
    %1025 = vmatpush1.msra.mxu0 %v450
    %1026 = vmatprep.subr.mxu0 %v455
    %1027 = vmatpush1.msra.mxu0 %v454
    %1028 = vmatprep.subr.mxu0 %v459
    %1029 = vmatpush1.msra.mxu0 %v458
    %1030 = vmatprep.subr.mxu0 %v463
    %1031 = vmatpush1.msra.mxu0 %v462
    %1032 = vmatprep.subr.mxu0 %v467
    %1033 = vmatpush1.msra.mxu0 %v466
    %1034 = vmatprep.subr.mxu0 %v471
    %1035 = vmatpush1.msra.mxu0 %v470
    %1036 = vmatprep.subr.mxu0 %v475
    %1037 = vmatpush1.msra.mxu0 %v474
    %1038 = vmatprep.subr.mxu0 %v479
    %1039 = vmatpush1.msra.mxu0 %v478
    %1040 = vmatprep.subr.mxu0 %v483
    %1041 = vmatpush1.msra.mxu0 %v482
    %1042 = vmatprep.subr.mxu0 %v487
    %1043 = vmatpush1.msra.mxu0 %v486
    %1044 = vmatprep.subr.mxu0 %v491
    %1045 = vmatpush1.msra.mxu0 %v490
    %1046 = vmatprep.subr.mxu0 %v495
    %1047 = vmatpush1.msra.mxu0 %v494
    %1048 = vmatprep.subr.mxu0 0.0
    %1049 = vmatpush1.msra.mxu0 0.0
    %1050 = vmatprep.subr.mxu0 0.0
    %1051 = vmatpush1.msra.mxu0 0.0
    %1052 = vmatprep.subr.mxu0 0.0
    %1053 = vmatpush1.msra.mxu0 0.0
    %1054 = vmatprep.subr.mxu0 0.0
    %1055 = vmatpush1.msra.mxu0 0.0
    %1056 = vmatprep.subr.mxu0 0.0
    %1057 = vmatpush1.msra.mxu0 0.0
    %1058 = vmatprep.subr.mxu0 0.0
    %1059 = vmatpush1.msra.mxu0 0.0
    %1060 = vmatprep.subr.mxu0 0.0
    %1061 = vmatpush1.msra.mxu0 0.0
    %1062 = vmatprep.subr.mxu0 0.0
    %1063 = vmatpush1.msra.mxu0 0.0
    %1064 = vmatprep.subr.mxu0 0.0
    %1065 = vmatpush1.msra.mxu0 0.0
    %1066 = vmatprep.subr.mxu0 0.0
    %1067 = vmatpush1.msra.mxu0 0.0
    %1068 = vmatprep.subr.mxu0 0.0
    %1069 = vmatpush1.msra.mxu0 0.0
    %1070 = vmatprep.subr.mxu0 0.0
    %1071 = vmatpush1.msra.mxu0 0.0
    %1072 = vmatprep.subr.mxu0 0.0
    %1073 = vmatpush1.msra.mxu0 0.0
    %1074 = vmatprep.subr.mxu0 0.0
    %1075 = vmatpush1.msra.mxu0 0.0
    %1076 = vmatprep.subr.mxu0 0.0
    %1077 = vmatpush1.msra.mxu0 0.0
    %1078 = vmatprep.subr.mxu0 0.0
    %1079 = vmatpush1.msra.mxu0 0.0
    %1080 = vmatprep.mubr.f32.mxu0 0.0
    %1081 = vmatmul.mubr.f32.gmra.mrb[0].mxu0 %v1008
    %v1082 = vpop.f32.mrb[0].mxu0
    %v1083 = vadd.f32 0.0, %v1082
    %v1084 = vpop.f32.mrb[0].mxu0
    %v1085 = vadd.f32 0.0, %v1084
    %1086 = vdwg.mxu0
    %1087 = vmatprep.subr.mxu0 %v437
    %1088 = vmatpush1.msra.mxu0 %v436
    %1089 = vmatprep.subr.mxu0 %v441
    %1090 = vmatpush1.msra.mxu0 %v440
    %1091 = vmatprep.subr.mxu0 %v445
    %1092 = vmatpush1.msra.mxu0 %v444
    %1093 = vmatprep.subr.mxu0 %v449
    %1094 = vmatpush1.msra.mxu0 %v448
    %1095 = vmatprep.subr.mxu0 %v453
    %1096 = vmatpush1.msra.mxu0 %v452
    %1097 = vmatprep.subr.mxu0 %v457
    %1098 = vmatpush1.msra.mxu0 %v456
    %1099 = vmatprep.subr.mxu0 %v461
    %1100 = vmatpush1.msra.mxu0 %v460
    %1101 = vmatprep.subr.mxu0 %v465
    %1102 = vmatpush1.msra.mxu0 %v464
    %1103 = vmatprep.subr.mxu0 %v469
    %1104 = vmatpush1.msra.mxu0 %v468
    %1105 = vmatprep.subr.mxu0 %v473
    %1106 = vmatpush1.msra.mxu0 %v472
    %1107 = vmatprep.subr.mxu0 %v477
    %1108 = vmatpush1.msra.mxu0 %v476
    %1109 = vmatprep.subr.mxu0 %v481
    %1110 = vmatpush1.msra.mxu0 %v480
    %1111 = vmatprep.subr.mxu0 %v485
    %1112 = vmatpush1.msra.mxu0 %v484
    %1113 = vmatprep.subr.mxu0 %v489
    %1114 = vmatpush1.msra.mxu0 %v488
    %1115 = vmatprep.subr.mxu0 %v493
    %1116 = vmatpush1.msra.mxu0 %v492
    %1117 = vmatprep.subr.mxu0 %v497
    %1118 = vmatpush1.msra.mxu0 %v496
    %1119 = vmatprep.subr.mxu0 0.0
    %1120 = vmatpush1.msra.mxu0 0.0
    %1121 = vmatprep.subr.mxu0 0.0
    %1122 = vmatpush1.msra.mxu0 0.0
    %1123 = vmatprep.subr.mxu0 0.0
    %1124 = vmatpush1.msra.mxu0 0.0
    %1125 = vmatprep.subr.mxu0 0.0
    %1126 = vmatpush1.msra.mxu0 0.0
    %1127 = vmatprep.subr.mxu0 0.0
    %1128 = vmatpush1.msra.mxu0 0.0
    %1129 = vmatprep.subr.mxu0 0.0
    %1130 = vmatpush1.msra.mxu0 0.0
    %1131 = vmatprep.subr.mxu0 0.0
    %1132 = vmatpush1.msra.mxu0 0.0
    %1133 = vmatprep.subr.mxu0 0.0
    %1134 = vmatpush1.msra.mxu0 0.0
    %1135 = vmatprep.subr.mxu0 0.0
    %1136 = vmatpush1.msra.mxu0 0.0
    %1137 = vmatprep.subr.mxu0 0.0
    %1138 = vmatpush1.msra.mxu0 0.0
    %1139 = vmatprep.subr.mxu0 0.0
    %1140 = vmatpush1.msra.mxu0 0.0
    %1141 = vmatprep.subr.mxu0 0.0
    %1142 = vmatpush1.msra.mxu0 0.0
    %1143 = vmatprep.subr.mxu0 0.0
    %1144 = vmatpush1.msra.mxu0 0.0
    %1145 = vmatprep.subr.mxu0 0.0
    %1146 = vmatpush1.msra.mxu0 0.0
    %1147 = vmatprep.subr.mxu0 0.0
    %1148 = vmatpush1.msra.mxu0 0.0
    %1149 = vmatprep.subr.mxu0 0.0
    %1150 = vmatpush1.msra.mxu0 0.0
    %1151 = vmatprep.mubr.f32.mxu0 0.0
    %1152 = vmatmul.mubr.f32.gmra.mrb[0].mxu0 %v1008
    %v1153 = vpop.f32.mrb[0].mxu0
    %v1154 = vadd.f32 0.0, %v1153
    %v1155 = vpop.f32.mrb[0].mxu0
    %v1156 = vadd.f32 0.0, %v1155
    %1157 = vdwg.mxu0
    %v1158 = vadd.f32 %v1012, %v1083
    %v1159 = vadd.f32 %v1013, %v1085
    %v1160 = vadd.f32 %v1014, %v1154
    %v1161 = vadd.f32 %v1015, %v1156
    %v1162 = vmul.f32 %v1158, 0.5
    %v1163 = vtanh.pop %v1162
    %v1164 = vmul.f32 %v1163, 0.5
    %v1165 = vadd.f32 %v1164, 0.5
    %v1166 = vmul.f32 %v1159, 0.5
    %v1167 = vtanh.pop %v1166
    %v1168 = vmul.f32 %v1167, 0.5
    %v1169 = vadd.f32 %v1168, 0.5
    %v1170 = vtanh.pop %v1160
    %v1171 = vmul.f32 %v1161, 0.5
    %v1172 = vtanh.pop %v1171
    %v1173 = vmul.f32 %v1172, 0.5
    %v1174 = vadd.f32 %v1173, 0.5
    %v1175 = vmul.f32 %v1169, %v1006
    %v1176 = vmul.f32 %v1165, %v1170
    %v1177 = vadd.f32 %v1175, %v1176
    %v1178 = vtanh.pop %v1177
    %v1179 = vmul.f32 %v1174, %v1178
    %s1180 = scalar_lea.vmem [#allocation6], 24
    %1181 = vst [vmem:[%s1180] sm:$0xff] %v1179
    %s1182 = scalar_lea.vmem [#allocation5], 128
    %v1183 = vld [vmem:[%s1182] sm:$0xff]
    %v1184 = vld [vmem:[%s1182 + $0x8] sm:$0xff]
    %v1185 = vld [vmem:[%s1182 + $0x10] sm:$0xff]
    %v1186 = vld [vmem:[%s1182 + $0x18] sm:$0xff]
    %1187 = vmatprep.subr.mxu0 %v435
    %1188 = vmatpush1.msra.mxu0 %v434
    %1189 = vmatprep.subr.mxu0 %v439
    %1190 = vmatpush1.msra.mxu0 %v438
    %1191 = vmatprep.subr.mxu0 %v443
    %1192 = vmatpush1.msra.mxu0 %v442
    %1193 = vmatprep.subr.mxu0 %v447
    %1194 = vmatpush1.msra.mxu0 %v446
    %1195 = vmatprep.subr.mxu0 %v451
    %1196 = vmatpush1.msra.mxu0 %v450
    %1197 = vmatprep.subr.mxu0 %v455
    %1198 = vmatpush1.msra.mxu0 %v454
    %1199 = vmatprep.subr.mxu0 %v459
    %1200 = vmatpush1.msra.mxu0 %v458
    %1201 = vmatprep.subr.mxu0 %v463
    %1202 = vmatpush1.msra.mxu0 %v462
    %1203 = vmatprep.subr.mxu0 %v467
    %1204 = vmatpush1.msra.mxu0 %v466
    %1205 = vmatprep.subr.mxu0 %v471
    %1206 = vmatpush1.msra.mxu0 %v470
    %1207 = vmatprep.subr.mxu0 %v475
    %1208 = vmatpush1.msra.mxu0 %v474
    %1209 = vmatprep.subr.mxu0 %v479
    %1210 = vmatpush1.msra.mxu0 %v478
    %1211 = vmatprep.subr.mxu0 %v483
    %1212 = vmatpush1.msra.mxu0 %v482
    %1213 = vmatprep.subr.mxu0 %v487
    %1214 = vmatpush1.msra.mxu0 %v486
    %1215 = vmatprep.subr.mxu0 %v491
    %1216 = vmatpush1.msra.mxu0 %v490
    %1217 = vmatprep.subr.mxu0 %v495
    %1218 = vmatpush1.msra.mxu0 %v494
    %1219 = vmatprep.subr.mxu0 0.0
    %1220 = vmatpush1.msra.mxu0 0.0
    %1221 = vmatprep.subr.mxu0 0.0
    %1222 = vmatpush1.msra.mxu0 0.0
    %1223 = vmatprep.subr.mxu0 0.0
    %1224 = vmatpush1.msra.mxu0 0.0
    %1225 = vmatprep.subr.mxu0 0.0
    %1226 = vmatpush1.msra.mxu0 0.0
    %1227 = vmatprep.subr.mxu0 0.0
    %1228 = vmatpush1.msra.mxu0 0.0
    %1229 = vmatprep.subr.mxu0 0.0
    %1230 = vmatpush1.msra.mxu0 0.0
    %1231 = vmatprep.subr.mxu0 0.0
    %1232 = vmatpush1.msra.mxu0 0.0
    %1233 = vmatprep.subr.mxu0 0.0
    %1234 = vmatpush1.msra.mxu0 0.0
    %1235 = vmatprep.subr.mxu0 0.0
    %1236 = vmatpush1.msra.mxu0 0.0
    %1237 = vmatprep.subr.mxu0 0.0
    %1238 = vmatpush1.msra.mxu0 0.0
    %1239 = vmatprep.subr.mxu0 0.0
    %1240 = vmatpush1.msra.mxu0 0.0
    %1241 = vmatprep.subr.mxu0 0.0
    %1242 = vmatpush1.msra.mxu0 0.0
    %1243 = vmatprep.subr.mxu0 0.0
    %1244 = vmatpush1.msra.mxu0 0.0
    %1245 = vmatprep.subr.mxu0 0.0
    %1246 = vmatpush1.msra.mxu0 0.0
    %1247 = vmatprep.subr.mxu0 0.0
    %1248 = vmatpush1.msra.mxu0 0.0
    %1249 = vmatprep.subr.mxu0 0.0
    %1250 = vmatpush1.msra.mxu0 0.0
    %1251 = vmatprep.mubr.f32.mxu0 0.0
    %1252 = vmatmul.mubr.f32.gmra.mrb[0].mxu0 %v1179
    %v1253 = vpop.f32.mrb[0].mxu0
    %v1254 = vadd.f32 0.0, %v1253
    %v1255 = vpop.f32.mrb[0].mxu0
    %v1256 = vadd.f32 0.0, %v1255
    %1257 = vdwg.mxu0
    %1258 = vmatprep.subr.mxu0 %v437
    %1259 = vmatpush1.msra.mxu0 %v436
    %1260 = vmatprep.subr.mxu0 %v441
    %1261 = vmatpush1.msra.mxu0 %v440
    %1262 = vmatprep.subr.mxu0 %v445
    %1263 = vmatpush1.msra.mxu0 %v444
    %1264 = vmatprep.subr.mxu0 %v449
    %1265 = vmatpush1.msra.mxu0 %v448
    %1266 = vmatprep.subr.mxu0 %v453
    %1267 = vmatpush1.msra.mxu0 %v452
    %1268 = vmatprep.subr.mxu0 %v457
    %1269 = vmatpush1.msra.mxu0 %v456
    %1270 = vmatprep.subr.mxu0 %v461
    %1271 = vmatpush1.msra.mxu0 %v460
    %1272 = vmatprep.subr.mxu0 %v465
    %1273 = vmatpush1.msra.mxu0 %v464
    %1274 = vmatprep.subr.mxu0 %v469
    %1275 = vmatpush1.msra.mxu0 %v468
    %1276 = vmatprep.subr.mxu0 %v473
    %1277 = vmatpush1.msra.mxu0 %v472
    %1278 = vmatprep.subr.mxu0 %v477
    %1279 = vmatpush1.msra.mxu0 %v476
    %1280 = vmatprep.subr.mxu0 %v481
    %1281 = vmatpush1.msra.mxu0 %v480
    %1282 = vmatprep.subr.mxu0 %v485
    %1283 = vmatpush1.msra.mxu0 %v484
    %1284 = vmatprep.subr.mxu0 %v489
    %1285 = vmatpush1.msra.mxu0 %v488
    %1286 = vmatprep.subr.mxu0 %v493
    %1287 = vmatpush1.msra.mxu0 %v492
    %1288 = vmatprep.subr.mxu0 %v497
    %1289 = vmatpush1.msra.mxu0 %v496
    %1290 = vmatprep.subr.mxu0 0.0
    %1291 = vmatpush1.msra.mxu0 0.0
    %1292 = vmatprep.subr.mxu0 0.0
    %1293 = vmatpush1.msra.mxu0 0.0
    %1294 = vmatprep.subr.mxu0 0.0
    %1295 = vmatpush1.msra.mxu0 0.0
    %1296 = vmatprep.subr.mxu0 0.0
    %1297 = vmatpush1.msra.mxu0 0.0
    %1298 = vmatprep.subr.mxu0 0.0
    %1299 = vmatpush1.msra.mxu0 0.0
    %1300 = vmatprep.subr.mxu0 0.0
    %1301 = vmatpush1.msra.mxu0 0.0
    %1302 = vmatprep.subr.mxu0 0.0
    %1303 = vmatpush1.msra.mxu0 0.0
    %1304 = vmatprep.subr.mxu0 0.0
    %1305 = vmatpush1.msra.mxu0 0.0
    %1306 = vmatprep.subr.mxu0 0.0
    %1307 = vmatpush1.msra.mxu0 0.0
    %1308 = vmatprep.subr.mxu0 0.0
    %1309 = vmatpush1.msra.mxu0 0.0
    %1310 = vmatprep.subr.mxu0 0.0
    %1311 = vmatpush1.msra.mxu0 0.0
    %1312 = vmatprep.subr.mxu0 0.0
    %1313 = vmatpush1.msra.mxu0 0.0
    %1314 = vmatprep.subr.mxu0 0.0
    %1315 = vmatpush1.msra.mxu0 0.0
    %1316 = vmatprep.subr.mxu0 0.0
    %1317 = vmatpush1.msra.mxu0 0.0
    %1318 = vmatprep.subr.mxu0 0.0
    %1319 = vmatpush1.msra.mxu0 0.0
    %1320 = vmatprep.subr.mxu0 0.0
    %1321 = vmatpush1.msra.mxu0 0.0
    %1322 = vmatprep.mubr.f32.mxu0 0.0
    %1323 = vmatmul.mubr.f32.gmra.mrb[0].mxu0 %v1179
    %v1324 = vpop.f32.mrb[0].mxu0
    %v1325 = vadd.f32 0.0, %v1324
    %v1326 = vpop.f32.mrb[0].mxu0
    %v1327 = vadd.f32 0.0, %v1326
    %1328 = vdwg.mxu0
    %v1329 = vadd.f32 %v1183, %v1254
    %v1330 = vadd.f32 %v1184, %v1256
    %v1331 = vadd.f32 %v1185, %v1325
    %v1332 = vadd.f32 %v1186, %v1327
    %v1333 = vmul.f32 %v1329, 0.5
    %v1334 = vtanh.pop %v1333
    %v1335 = vmul.f32 %v1334, 0.5
    %v1336 = vadd.f32 %v1335, 0.5
    %v1337 = vmul.f32 %v1330, 0.5
    %v1338 = vtanh.pop %v1337
    %v1339 = vmul.f32 %v1338, 0.5
    %v1340 = vadd.f32 %v1339, 0.5
    %v1341 = vtanh.pop %v1331
    %v1342 = vmul.f32 %v1332, 0.5
    %v1343 = vtanh.pop %v1342
    %v1344 = vmul.f32 %v1343, 0.5
    %v1345 = vadd.f32 %v1344, 0.5
    %v1346 = vmul.f32 %v1340, %v1177
    %v1347 = vmul.f32 %v1336, %v1341
    %v1348 = vadd.f32 %v1346, %v1347
    %v1349 = vtanh.pop %v1348
    %v1350 = vmul.f32 %v1345, %v1349
    %s1351 = scalar_lea.vmem [#allocation6], 32
    %1352 = vst [vmem:[%s1351] sm:$0xff] %v1350
    %s1353 = scalar_lea.vmem [#allocation5], 160
    %v1354 = vld [vmem:[%s1353] sm:$0xff]
    %v1355 = vld [vmem:[%s1353 + $0x8] sm:$0xff]
    %v1356 = vld [vmem:[%s1353 + $0x10] sm:$0xff]
    %v1357 = vld [vmem:[%s1353 + $0x18] sm:$0xff]
    %1358 = vmatprep.subr.mxu0 %v435
    %1359 = vmatpush1.msra.mxu0 %v434
    %1360 = vmatprep.subr.mxu0 %v439
    %1361 = vmatpush1.msra.mxu0 %v438
    %1362 = vmatprep.subr.mxu0 %v443
    %1363 = vmatpush1.msra.mxu0 %v442
    %1364 = vmatprep.subr.mxu0 %v447
    %1365 = vmatpush1.msra.mxu0 %v446
    %1366 = vmatprep.subr.mxu0 %v451
    %1367 = vmatpush1.msra.mxu0 %v450
    %1368 = vmatprep.subr.mxu0 %v455
    %1369 = vmatpush1.msra.mxu0 %v454
    %1370 = vmatprep.subr.mxu0 %v459
    %1371 = vmatpush1.msra.mxu0 %v458
    %1372 = vmatprep.subr.mxu0 %v463
    %1373 = vmatpush1.msra.mxu0 %v462
    %1374 = vmatprep.subr.mxu0 %v467
    %1375 = vmatpush1.msra.mxu0 %v466
    %1376 = vmatprep.subr.mxu0 %v471
    %1377 = vmatpush1.msra.mxu0 %v470
    %1378 = vmatprep.subr.mxu0 %v475
    %1379 = vmatpush1.msra.mxu0 %v474
    %1380 = vmatprep.subr.mxu0 %v479
    %1381 = vmatpush1.msra.mxu0 %v478
    %1382 = vmatprep.subr.mxu0 %v483
    %1383 = vmatpush1.msra.mxu0 %v482
    %1384 = vmatprep.subr.mxu0 %v487
    %1385 = vmatpush1.msra.mxu0 %v486
    %1386 = vmatprep.subr.mxu0 %v491
    %1387 = vmatpush1.msra.mxu0 %v490
    %1388 = vmatprep.subr.mxu0 %v495
    %1389 = vmatpush1.msra.mxu0 %v494
    %1390 = vmatprep.subr.mxu0 0.0
    %1391 = vmatpush1.msra.mxu0 0.0
    %1392 = vmatprep.subr.mxu0 0.0
    %1393 = vmatpush1.msra.mxu0 0.0
    %1394 = vmatprep.subr.mxu0 0.0
    %1395 = vmatpush1.msra.mxu0 0.0
    %1396 = vmatprep.subr.mxu0 0.0
    %1397 = vmatpush1.msra.mxu0 0.0
    %1398 = vmatprep.subr.mxu0 0.0
    %1399 = vmatpush1.msra.mxu0 0.0
    %1400 = vmatprep.subr.mxu0 0.0
    %1401 = vmatpush1.msra.mxu0 0.0
    %1402 = vmatprep.subr.mxu0 0.0
    %1403 = vmatpush1.msra.mxu0 0.0
    %1404 = vmatprep.subr.mxu0 0.0
    %1405 = vmatpush1.msra.mxu0 0.0
    %1406 = vmatprep.subr.mxu0 0.0
    %1407 = vmatpush1.msra.mxu0 0.0
    %1408 = vmatprep.subr.mxu0 0.0
    %1409 = vmatpush1.msra.mxu0 0.0
    %1410 = vmatprep.subr.mxu0 0.0
    %1411 = vmatpush1.msra.mxu0 0.0
    %1412 = vmatprep.subr.mxu0 0.0
    %1413 = vmatpush1.msra.mxu0 0.0
    %1414 = vmatprep.subr.mxu0 0.0
    %1415 = vmatpush1.msra.mxu0 0.0
    %1416 = vmatprep.subr.mxu0 0.0
    %1417 = vmatpush1.msra.mxu0 0.0
    %1418 = vmatprep.subr.mxu0 0.0
    %1419 = vmatpush1.msra.mxu0 0.0
    %1420 = vmatprep.subr.mxu0 0.0
    %1421 = vmatpush1.msra.mxu0 0.0
    %1422 = vmatprep.mubr.f32.mxu0 0.0
    %1423 = vmatmul.mubr.f32.gmra.mrb[0].mxu0 %v1350
    %v1424 = vpop.f32.mrb[0].mxu0
    %v1425 = vadd.f32 0.0, %v1424
    %v1426 = vpop.f32.mrb[0].mxu0
    %v1427 = vadd.f32 0.0, %v1426
    %1428 = vdwg.mxu0
    %1429 = vmatprep.subr.mxu0 %v437
    %1430 = vmatpush1.msra.mxu0 %v436
    %1431 = vmatprep.subr.mxu0 %v441
    %1432 = vmatpush1.msra.mxu0 %v440
    %1433 = vmatprep.subr.mxu0 %v445
    %1434 = vmatpush1.msra.mxu0 %v444
    %1435 = vmatprep.subr.mxu0 %v449
    %1436 = vmatpush1.msra.mxu0 %v448
    %1437 = vmatprep.subr.mxu0 %v453
    %1438 = vmatpush1.msra.mxu0 %v452
    %1439 = vmatprep.subr.mxu0 %v457
    %1440 = vmatpush1.msra.mxu0 %v456
    %1441 = vmatprep.subr.mxu0 %v461
    %1442 = vmatpush1.msra.mxu0 %v460
    %1443 = vmatprep.subr.mxu0 %v465
    %1444 = vmatpush1.msra.mxu0 %v464
    %1445 = vmatprep.subr.mxu0 %v469
    %1446 = vmatpush1.msra.mxu0 %v468
    %1447 = vmatprep.subr.mxu0 %v473
    %1448 = vmatpush1.msra.mxu0 %v472
    %1449 = vmatprep.subr.mxu0 %v477
    %1450 = vmatpush1.msra.mxu0 %v476
    %1451 = vmatprep.subr.mxu0 %v481
    %1452 = vmatpush1.msra.mxu0 %v480
    %1453 = vmatprep.subr.mxu0 %v485
    %1454 = vmatpush1.msra.mxu0 %v484
    %1455 = vmatprep.subr.mxu0 %v489
    %1456 = vmatpush1.msra.mxu0 %v488
    %1457 = vmatprep.subr.mxu0 %v493
    %1458 = vmatpush1.msra.mxu0 %v492
    %1459 = vmatprep.subr.mxu0 %v497
    %1460 = vmatpush1.msra.mxu0 %v496
    %1461 = vmatprep.subr.mxu0 0.0
    %1462 = vmatpush1.msra.mxu0 0.0
    %1463 = vmatprep.subr.mxu0 0.0
    %1464 = vmatpush1.msra.mxu0 0.0
    %1465 = vmatprep.subr.mxu0 0.0
    %1466 = vmatpush1.msra.mxu0 0.0
    %1467 = vmatprep.subr.mxu0 0.0
    %1468 = vmatpush1.msra.mxu0 0.0
    %1469 = vmatprep.subr.mxu0 0.0
    %1470 = vmatpush1.msra.mxu0 0.0
    %1471 = vmatprep.subr.mxu0 0.0
    %1472 = vmatpush1.msra.mxu0 0.0
    %1473 = vmatprep.subr.mxu0 0.0
    %1474 = vmatpush1.msra.mxu0 0.0
    %1475 = vmatprep.subr.mxu0 0.0
    %1476 = vmatpush1.msra.mxu0 0.0
    %1477 = vmatprep.subr.mxu0 0.0
    %1478 = vmatpush1.msra.mxu0 0.0
    %1479 = vmatprep.subr.mxu0 0.0
    %1480 = vmatpush1.msra.mxu0 0.0
    %1481 = vmatprep.subr.mxu0 0.0
    %1482 = vmatpush1.msra.mxu0 0.0
    %1483 = vmatprep.subr.mxu0 0.0
    %1484 = vmatpush1.msra.mxu0 0.0
    %1485 = vmatprep.subr.mxu0 0.0
    %1486 = vmatpush1.msra.mxu0 0.0
    %1487 = vmatprep.subr.mxu0 0.0
    %1488 = vmatpush1.msra.mxu0 0.0
    %1489 = vmatprep.subr.mxu0 0.0
    %1490 = vmatpush1.msra.mxu0 0.0
    %1491 = vmatprep.subr.mxu0 0.0
    %1492 = vmatpush1.msra.mxu0 0.0
    %1493 = vmatprep.mubr.f32.mxu0 0.0
    %1494 = vmatmul.mubr.f32.gmra.mrb[0].mxu0 %v1350
    %v1495 = vpop.f32.mrb[0].mxu0
    %v1496 = vadd.f32 0.0, %v1495
    %v1497 = vpop.f32.mrb[0].mxu0
    %v1498 = vadd.f32 0.0, %v1497
    %1499 = vdwg.mxu0
    %v1500 = vadd.f32 %v1354, %v1425
    %v1501 = vadd.f32 %v1355, %v1427
    %v1502 = vadd.f32 %v1356, %v1496
    %v1503 = vadd.f32 %v1357, %v1498
    %v1504 = vmul.f32 %v1500, 0.5
    %v1505 = vtanh.pop %v1504
    %v1506 = vmul.f32 %v1505, 0.5
    %v1507 = vadd.f32 %v1506, 0.5
    %v1508 = vmul.f32 %v1501, 0.5
    %v1509 = vtanh.pop %v1508
    %v1510 = vmul.f32 %v1509, 0.5
    %v1511 = vadd.f32 %v1510, 0.5
    %v1512 = vtanh.pop %v1502
    %v1513 = vmul.f32 %v1503, 0.5
    %v1514 = vtanh.pop %v1513
    %v1515 = vmul.f32 %v1514, 0.5
    %v1516 = vadd.f32 %v1515, 0.5
    %v1517 = vmul.f32 %v1511, %v1348
    %v1518 = vmul.f32 %v1507, %v1512
    %v1519 = vadd.f32 %v1517, %v1518
    %v1520 = vtanh.pop %v1519
    %v1521 = vmul.f32 %v1516, %v1520
    %s1522 = scalar_lea.vmem [#allocation6], 40
    %1523 = vst [vmem:[%s1522] sm:$0xff] %v1521
    %s1524 = scalar_lea.vmem [#allocation5], 192
    %v1525 = vld [vmem:[%s1524] sm:$0xff]
    %v1526 = vld [vmem:[%s1524 + $0x8] sm:$0xff]
    %v1527 = vld [vmem:[%s1524 + $0x10] sm:$0xff]
    %v1528 = vld [vmem:[%s1524 + $0x18] sm:$0xff]
    %1529 = vmatprep.subr.mxu0 %v435
    %1530 = vmatpush1.msra.mxu0 %v434
    %1531 = vmatprep.subr.mxu0 %v439
    %1532 = vmatpush1.msra.mxu0 %v438
    %1533 = vmatprep.subr.mxu0 %v443
    %1534 = vmatpush1.msra.mxu0 %v442
    %1535 = vmatprep.subr.mxu0 %v447
    %1536 = vmatpush1.msra.mxu0 %v446
    %1537 = vmatprep.subr.mxu0 %v451
    %1538 = vmatpush1.msra.mxu0 %v450
    %1539 = vmatprep.subr.mxu0 %v455
    %1540 = vmatpush1.msra.mxu0 %v454
    %1541 = vmatprep.subr.mxu0 %v459
    %1542 = vmatpush1.msra.mxu0 %v458
    %1543 = vmatprep.subr.mxu0 %v463
    %1544 = vmatpush1.msra.mxu0 %v462
    %1545 = vmatprep.subr.mxu0 %v467
    %1546 = vmatpush1.msra.mxu0 %v466
    %1547 = vmatprep.subr.mxu0 %v471
    %1548 = vmatpush1.msra.mxu0 %v470
    %1549 = vmatprep.subr.mxu0 %v475
    %1550 = vmatpush1.msra.mxu0 %v474
    %1551 = vmatprep.subr.mxu0 %v479
    %1552 = vmatpush1.msra.mxu0 %v478
    %1553 = vmatprep.subr.mxu0 %v483
    %1554 = vmatpush1.msra.mxu0 %v482
    %1555 = vmatprep.subr.mxu0 %v487
    %1556 = vmatpush1.msra.mxu0 %v486
    %1557 = vmatprep.subr.mxu0 %v491
    %1558 = vmatpush1.msra.mxu0 %v490
    %1559 = vmatprep.subr.mxu0 %v495
    %1560 = vmatpush1.msra.mxu0 %v494
    %1561 = vmatprep.subr.mxu0 0.0
    %1562 = vmatpush1.msra.mxu0 0.0
    %1563 = vmatprep.subr.mxu0 0.0
    %1564 = vmatpush1.msra.mxu0 0.0
    %1565 = vmatprep.subr.mxu0 0.0
    %1566 = vmatpush1.msra.mxu0 0.0
    %1567 = vmatprep.subr.mxu0 0.0
    %1568 = vmatpush1.msra.mxu0 0.0
    %1569 = vmatprep.subr.mxu0 0.0
    %1570 = vmatpush1.msra.mxu0 0.0
    %1571 = vmatprep.subr.mxu0 0.0
    %1572 = vmatpush1.msra.mxu0 0.0
    %1573 = vmatprep.subr.mxu0 0.0
    %1574 = vmatpush1.msra.mxu0 0.0
    %1575 = vmatprep.subr.mxu0 0.0
    %1576 = vmatpush1.msra.mxu0 0.0
    %1577 = vmatprep.subr.mxu0 0.0
    %1578 = vmatpush1.msra.mxu0 0.0
    %1579 = vmatprep.subr.mxu0 0.0
    %1580 = vmatpush1.msra.mxu0 0.0
    %1581 = vmatprep.subr.mxu0 0.0
    %1582 = vmatpush1.msra.mxu0 0.0
    %1583 = vmatprep.subr.mxu0 0.0
    %1584 = vmatpush1.msra.mxu0 0.0
    %1585 = vmatprep.subr.mxu0 0.0
    %1586 = vmatpush1.msra.mxu0 0.0
    %1587 = vmatprep.subr.mxu0 0.0
    %1588 = vmatpush1.msra.mxu0 0.0
    %1589 = vmatprep.subr.mxu0 0.0
    %1590 = vmatpush1.msra.mxu0 0.0
    %1591 = vmatprep.subr.mxu0 0.0
    %1592 = vmatpush1.msra.mxu0 0.0
    %1593 = vmatprep.mubr.f32.mxu0 0.0
    %1594 = vmatmul.mubr.f32.gmra.mrb[0].mxu0 %v1521
    %v1595 = vpop.f32.mrb[0].mxu0
    %v1596 = vadd.f32 0.0, %v1595
    %v1597 = vpop.f32.mrb[0].mxu0
    %v1598 = vadd.f32 0.0, %v1597
    %1599 = vdwg.mxu0
    %1600 = vmatprep.subr.mxu0 %v437
    %1601 = vmatpush1.msra.mxu0 %v436
    %1602 = vmatprep.subr.mxu0 %v441
    %1603 = vmatpush1.msra.mxu0 %v440
    %1604 = vmatprep.subr.mxu0 %v445
    %1605 = vmatpush1.msra.mxu0 %v444
    %1606 = vmatprep.subr.mxu0 %v449
    %1607 = vmatpush1.msra.mxu0 %v448
    %1608 = vmatprep.subr.mxu0 %v453
    %1609 = vmatpush1.msra.mxu0 %v452
    %1610 = vmatprep.subr.mxu0 %v457
    %1611 = vmatpush1.msra.mxu0 %v456
    %1612 = vmatprep.subr.mxu0 %v461
    %1613 = vmatpush1.msra.mxu0 %v460
    %1614 = vmatprep.subr.mxu0 %v465
    %1615 = vmatpush1.msra.mxu0 %v464
    %1616 = vmatprep.subr.mxu0 %v469
    %1617 = vmatpush1.msra.mxu0 %v468
    %1618 = vmatprep.subr.mxu0 %v473
    %1619 = vmatpush1.msra.mxu0 %v472
    %1620 = vmatprep.subr.mxu0 %v477
    %1621 = vmatpush1.msra.mxu0 %v476
    %1622 = vmatprep.subr.mxu0 %v481
    %1623 = vmatpush1.msra.mxu0 %v480
    %1624 = vmatprep.subr.mxu0 %v485
    %1625 = vmatpush1.msra.mxu0 %v484
    %1626 = vmatprep.subr.mxu0 %v489
    %1627 = vmatpush1.msra.mxu0 %v488
    %1628 = vmatprep.subr.mxu0 %v493
    %1629 = vmatpush1.msra.mxu0 %v492
    %1630 = vmatprep.subr.mxu0 %v497
    %1631 = vmatpush1.msra.mxu0 %v496
    %1632 = vmatprep.subr.mxu0 0.0
    %1633 = vmatpush1.msra.mxu0 0.0
    %1634 = vmatprep.subr.mxu0 0.0
    %1635 = vmatpush1.msra.mxu0 0.0
    %1636 = vmatprep.subr.mxu0 0.0
    %1637 = vmatpush1.msra.mxu0 0.0
    %1638 = vmatprep.subr.mxu0 0.0
    %1639 = vmatpush1.msra.mxu0 0.0
    %1640 = vmatprep.subr.mxu0 0.0
    %1641 = vmatpush1.msra.mxu0 0.0
    %1642 = vmatprep.subr.mxu0 0.0
    %1643 = vmatpush1.msra.mxu0 0.0
    %1644 = vmatprep.subr.mxu0 0.0
    %1645 = vmatpush1.msra.mxu0 0.0
    %1646 = vmatprep.subr.mxu0 0.0
    %1647 = vmatpush1.msra.mxu0 0.0
    %1648 = vmatprep.subr.mxu0 0.0
    %1649 = vmatpush1.msra.mxu0 0.0
    %1650 = vmatprep.subr.mxu0 0.0
    %1651 = vmatpush1.msra.mxu0 0.0
    %1652 = vmatprep.subr.mxu0 0.0
    %1653 = vmatpush1.msra.mxu0 0.0
    %1654 = vmatprep.subr.mxu0 0.0
    %1655 = vmatpush1.msra.mxu0 0.0
    %1656 = vmatprep.subr.mxu0 0.0
    %1657 = vmatpush1.msra.mxu0 0.0
    %1658 = vmatprep.subr.mxu0 0.0
    %1659 = vmatpush1.msra.mxu0 0.0
    %1660 = vmatprep.subr.mxu0 0.0
    %1661 = vmatpush1.msra.mxu0 0.0
    %1662 = vmatprep.subr.mxu0 0.0
    %1663 = vmatpush1.msra.mxu0 0.0
    %1664 = vmatprep.mubr.f32.mxu0 0.0
    %1665 = vmatmul.mubr.f32.gmra.mrb[0].mxu0 %v1521
    %v1666 = vpop.f32.mrb[0].mxu0
    %v1667 = vadd.f32 0.0, %v1666
    %v1668 = vpop.f32.mrb[0].mxu0
    %v1669 = vadd.f32 0.0, %v1668
    %1670 = vdwg.mxu0
    %v1671 = vadd.f32 %v1525, %v1596
    %v1672 = vadd.f32 %v1526, %v1598
    %v1673 = vadd.f32 %v1527, %v1667
    %v1674 = vadd.f32 %v1528, %v1669
    %v1675 = vmul.f32 %v1671, 0.5
    %v1676 = vtanh.pop %v1675
    %v1677 = vmul.f32 %v1676, 0.5
    %v1678 = vadd.f32 %v1677, 0.5
    %v1679 = vmul.f32 %v1672, 0.5
    %v1680 = vtanh.pop %v1679
    %v1681 = vmul.f32 %v1680, 0.5
    %v1682 = vadd.f32 %v1681, 0.5
    %v1683 = vtanh.pop %v1673
    %v1684 = vmul.f32 %v1674, 0.5
    %v1685 = vtanh.pop %v1684
    %v1686 = vmul.f32 %v1685, 0.5
    %v1687 = vadd.f32 %v1686, 0.5
    %v1688 = vmul.f32 %v1682, %v1519
    %v1689 = vmul.f32 %v1678, %v1683
    %v1690 = vadd.f32 %v1688, %v1689
    %v1691 = vtanh.pop %v1690
    %v1692 = vmul.f32 %v1687, %v1691
    %s1693 = scalar_lea.vmem [#allocation6], 48
    %1694 = vst [vmem:[%s1693] sm:$0xff] %v1692
    %s1695 = scalar_lea.vmem [#allocation5], 224
    %v1696 = vld [vmem:[%s1695] sm:$0xff]
    %v1697 = vld [vmem:[%s1695 + $0x8] sm:$0xff]
    %v1698 = vld [vmem:[%s1695 + $0x10] sm:$0xff]
    %v1699 = vld [vmem:[%s1695 + $0x18] sm:$0xff]
    %1700 = vmatprep.subr.mxu0 %v435
    %1701 = vmatpush1.msra.mxu0 %v434
    %1702 = vmatprep.subr.mxu0 %v439
    %1703 = vmatpush1.msra.mxu0 %v438
    %1704 = vmatprep.subr.mxu0 %v443
    %1705 = vmatpush1.msra.mxu0 %v442
    %1706 = vmatprep.subr.mxu0 %v447
    %1707 = vmatpush1.msra.mxu0 %v446
    %1708 = vmatprep.subr.mxu0 %v451
    %1709 = vmatpush1.msra.mxu0 %v450
    %1710 = vmatprep.subr.mxu0 %v455
    %1711 = vmatpush1.msra.mxu0 %v454
    %1712 = vmatprep.subr.mxu0 %v459
    %1713 = vmatpush1.msra.mxu0 %v458
    %1714 = vmatprep.subr.mxu0 %v463
    %1715 = vmatpush1.msra.mxu0 %v462
    %1716 = vmatprep.subr.mxu0 %v467
    %1717 = vmatpush1.msra.mxu0 %v466
    %1718 = vmatprep.subr.mxu0 %v471
    %1719 = vmatpush1.msra.mxu0 %v470
    %1720 = vmatprep.subr.mxu0 %v475
    %1721 = vmatpush1.msra.mxu0 %v474
    %1722 = vmatprep.subr.mxu0 %v479
    %1723 = vmatpush1.msra.mxu0 %v478
    %1724 = vmatprep.subr.mxu0 %v483
    %1725 = vmatpush1.msra.mxu0 %v482
    %1726 = vmatprep.subr.mxu0 %v487
    %1727 = vmatpush1.msra.mxu0 %v486
    %1728 = vmatprep.subr.mxu0 %v491
    %1729 = vmatpush1.msra.mxu0 %v490
    %1730 = vmatprep.subr.mxu0 %v495
    %1731 = vmatpush1.msra.mxu0 %v494
    %1732 = vmatprep.subr.mxu0 0.0
    %1733 = vmatpush1.msra.mxu0 0.0
    %1734 = vmatprep.subr.mxu0 0.0
    %1735 = vmatpush1.msra.mxu0 0.0
    %1736 = vmatprep.subr.mxu0 0.0
    %1737 = vmatpush1.msra.mxu0 0.0
    %1738 = vmatprep.subr.mxu0 0.0
    %1739 = vmatpush1.msra.mxu0 0.0
    %1740 = vmatprep.subr.mxu0 0.0
    %1741 = vmatpush1.msra.mxu0 0.0
    %1742 = vmatprep.subr.mxu0 0.0
    %1743 = vmatpush1.msra.mxu0 0.0
    %1744 = vmatprep.subr.mxu0 0.0
    %1745 = vmatpush1.msra.mxu0 0.0
    %1746 = vmatprep.subr.mxu0 0.0
    %1747 = vmatpush1.msra.mxu0 0.0
    %1748 = vmatprep.subr.mxu0 0.0
    %1749 = vmatpush1.msra.mxu0 0.0
    %1750 = vmatprep.subr.mxu0 0.0
    %1751 = vmatpush1.msra.mxu0 0.0
    %1752 = vmatprep.subr.mxu0 0.0
    %1753 = vmatpush1.msra.mxu0 0.0
    %1754 = vmatprep.subr.mxu0 0.0
    %1755 = vmatpush1.msra.mxu0 0.0
    %1756 = vmatprep.subr.mxu0 0.0
    %1757 = vmatpush1.msra.mxu0 0.0
    %1758 = vmatprep.subr.mxu0 0.0
    %1759 = vmatpush1.msra.mxu0 0.0
    %1760 = vmatprep.subr.mxu0 0.0
    %1761 = vmatpush1.msra.mxu0 0.0
    %1762 = vmatprep.subr.mxu0 0.0
    %1763 = vmatpush1.msra.mxu0 0.0
    %1764 = vmatprep.mubr.f32.mxu0 0.0
    %1765 = vmatmul.mubr.f32.gmra.mrb[0].mxu0 %v1692
    %v1766 = vpop.f32.mrb[0].mxu0
    %v1767 = vadd.f32 0.0, %v1766
    %v1768 = vpop.f32.mrb[0].mxu0
    %v1769 = vadd.f32 0.0, %v1768
    %1770 = vdwg.mxu0
    %1771 = vmatprep.subr.mxu0 %v437
    %1772 = vmatpush1.msra.mxu0 %v436
    %1773 = vmatprep.subr.mxu0 %v441
    %1774 = vmatpush1.msra.mxu0 %v440
    %1775 = vmatprep.subr.mxu0 %v445
    %1776 = vmatpush1.msra.mxu0 %v444
    %1777 = vmatprep.subr.mxu0 %v449
    %1778 = vmatpush1.msra.mxu0 %v448
    %1779 = vmatprep.subr.mxu0 %v453
    %1780 = vmatpush1.msra.mxu0 %v452
    %1781 = vmatprep.subr.mxu0 %v457
    %1782 = vmatpush1.msra.mxu0 %v456
    %1783 = vmatprep.subr.mxu0 %v461
    %1784 = vmatpush1.msra.mxu0 %v460
    %1785 = vmatprep.subr.mxu0 %v465
    %1786 = vmatpush1.msra.mxu0 %v464
    %1787 = vmatprep.subr.mxu0 %v469
    %1788 = vmatpush1.msra.mxu0 %v468
    %1789 = vmatprep.subr.mxu0 %v473
    %1790 = vmatpush1.msra.mxu0 %v472
    %1791 = vmatprep.subr.mxu0 %v477
    %1792 = vmatpush1.msra.mxu0 %v476
    %1793 = vmatprep.subr.mxu0 %v481
    %1794 = vmatpush1.msra.mxu0 %v480
    %1795 = vmatprep.subr.mxu0 %v485
    %1796 = vmatpush1.msra.mxu0 %v484
    %1797 = vmatprep.subr.mxu0 %v489
    %1798 = vmatpush1.msra.mxu0 %v488
    %1799 = vmatprep.subr.mxu0 %v493
    %1800 = vmatpush1.msra.mxu0 %v492
    %1801 = vmatprep.subr.mxu0 %v497
    %1802 = vmatpush1.msra.mxu0 %v496
    %1803 = vmatprep.subr.mxu0 0.0
    %1804 = vmatpush1.msra.mxu0 0.0
    %1805 = vmatprep.subr.mxu0 0.0
    %1806 = vmatpush1.msra.mxu0 0.0
    %1807 = vmatprep.subr.mxu0 0.0
    %1808 = vmatpush1.msra.mxu0 0.0
    %1809 = vmatprep.subr.mxu0 0.0
    %1810 = vmatpush1.msra.mxu0 0.0
    %1811 = vmatprep.subr.mxu0 0.0
    %1812 = vmatpush1.msra.mxu0 0.0
    %1813 = vmatprep.subr.mxu0 0.0
    %1814 = vmatpush1.msra.mxu0 0.0
    %1815 = vmatprep.subr.mxu0 0.0
    %1816 = vmatpush1.msra.mxu0 0.0
    %1817 = vmatprep.subr.mxu0 0.0
    %1818 = vmatpush1.msra.mxu0 0.0
    %1819 = vmatprep.subr.mxu0 0.0
    %1820 = vmatpush1.msra.mxu0 0.0
    %1821 = vmatprep.subr.mxu0 0.0
    %1822 = vmatpush1.msra.mxu0 0.0
    %1823 = vmatprep.subr.mxu0 0.0
    %1824 = vmatpush1.msra.mxu0 0.0
    %1825 = vmatprep.subr.mxu0 0.0
    %1826 = vmatpush1.msra.mxu0 0.0
    %1827 = vmatprep.subr.mxu0 0.0
    %1828 = vmatpush1.msra.mxu0 0.0
    %1829 = vmatprep.subr.mxu0 0.0
    %1830 = vmatpush1.msra.mxu0 0.0
    %1831 = vmatprep.subr.mxu0 0.0
    %1832 = vmatpush1.msra.mxu0 0.0
    %1833 = vmatprep.subr.mxu0 0.0
    %1834 = vmatpush1.msra.mxu0 0.0
    %1835 = vmatprep.mubr.f32.mxu0 0.0
    %1836 = vmatmul.mubr.f32.gmra.mrb[0].mxu0 %v1692
    %v1837 = vpop.f32.mrb[0].mxu0
    %v1838 = vadd.f32 0.0, %v1837
    %v1839 = vpop.f32.mrb[0].mxu0
    %v1840 = vadd.f32 0.0, %v1839
    %1841 = vdwg.mxu0
    %v1842 = vadd.f32 %v1696, %v1767
    %v1843 = vadd.f32 %v1697, %v1769
    %v1844 = vadd.f32 %v1698, %v1838
    %v1845 = vadd.f32 %v1699, %v1840
    %v1846 = vmul.f32 %v1842, 0.5
    %v1847 = vtanh.pop %v1846
    %v1848 = vmul.f32 %v1847, 0.5
    %v1849 = vadd.f32 %v1848, 0.5
    %v1850 = vmul.f32 %v1843, 0.5
    %v1851 = vtanh.pop %v1850
    %v1852 = vmul.f32 %v1851, 0.5
    %v1853 = vadd.f32 %v1852, 0.5
    %v1854 = vtanh.pop %v1844
    %v1855 = vmul.f32 %v1845, 0.5
    %v1856 = vtanh.pop %v1855
    %v1857 = vmul.f32 %v1856, 0.5
    %v1858 = vadd.f32 %v1857, 0.5
    %v1859 = vmul.f32 %v1853, %v1690
    %v1860 = vmul.f32 %v1849, %v1854
    %v1861 = vadd.f32 %v1859, %v1860
    %v1862 = vtanh.pop %v1861
    %v1863 = vmul.f32 %v1858, %v1862
    %s1864 = scalar_lea.vmem [#allocation6], 56
    %1865 = vst [vmem:[%s1864] sm:$0xff] %v1863
    %1866 = vst [vmem:[#allocation7] sm:$0xff] %v1863
    %1867 = vst [vmem:[#allocation8] sm:$0xff] %v1861
    %v1868 = vld [vmem:[#allocation6] sm:$0xff]
    %v1869 = vld [vmem:[#allocation6 + $0x8] sm:$0xff]
    %v1870 = vld [vmem:[#allocation6 + $0x10] sm:$0xff]
    %v1871 = vld [vmem:[#allocation6 + $0x18] sm:$0xff]
    %v1872 = vld [vmem:[#allocation6 + $0x20] sm:$0xff]
    %v1873 = vld [vmem:[#allocation6 + $0x28] sm:$0xff]
    %v1874 = vld [vmem:[#allocation6 + $0x30] sm:$0xff]
    %v1875 = vld [vmem:[#allocation6 + $0x38] sm:$0xff]
    %v1876 = vld [vmem:[#allocation4] sm:$0xff]
    %v1877 = vld [vmem:[#allocation4 + $0x8] sm:$0xff]
    %v1878 = vld [vmem:[#allocation4 + $0x10] sm:$0xff]
    %v1879 = vld [vmem:[#allocation4 + $0x18] sm:$0xff]
    %v1880 = vld [vmem:[#allocation4 + $0x20] sm:$0xff]
    %v1881 = vld [vmem:[#allocation4 + $0x28] sm:$0xff]
    %v1882 = vld [vmem:[#allocation4 + $0x30] sm:$0xff]
    %v1883 = vld [vmem:[#allocation4 + $0x38] sm:$0xff]
    %v1884 = vld [vmem:[#allocation4 + $0x40] sm:$0xff]
    %v1885 = vld [vmem:[#allocation4 + $0x48] sm:$0xff]
    %v1886 = vld [vmem:[#allocation4 + $0x50] sm:$0xff]
    %v1887 = vld [vmem:[#allocation4 + $0x58] sm:$0xff]
    %v1888 = vld [vmem:[#allocation4 + $0x60] sm:$0xff]
    %v1889 = vld [vmem:[#allocation4 + $0x68] sm:$0xff]
    %v1890 = vld [vmem:[#allocation4 + $0x70] sm:$0xff]
    %v1891 = vld [vmem:[#allocation4 + $0x78] sm:$0xff]
    %v1892 = vld [vmem:[%s5] sm:$0x1]
    %v1894 = vlaneseq
    %v1895 = vshrl.u32 %v1894, 7
    %v1896 = vsub.s32 0, %v1895
    %v1897 = vrot.slane %v1892, %v1896
    %1899 = vmatprep.subr.mxu0 0.0
    %1900 = vmatpush1.msra.mxu0 %v1876
    %1901 = vmatprep.subr.mxu0 0.0
    %1902 = vmatpush1.msra.mxu0 %v1877
    %1903 = vmatprep.subr.mxu0 0.0
    %1904 = vmatpush1.msra.mxu0 %v1878
    %1905 = vmatprep.subr.mxu0 0.0
    %1906 = vmatpush1.msra.mxu0 %v1879
    %1907 = vmatprep.subr.mxu0 0.0
    %1908 = vmatpush1.msra.mxu0 %v1880
    %1909 = vmatprep.subr.mxu0 0.0
    %1910 = vmatpush1.msra.mxu0 %v1881
    %1911 = vmatprep.subr.mxu0 0.0
    %1912 = vmatpush1.msra.mxu0 %v1882
    %1913 = vmatprep.subr.mxu0 0.0
    %1914 = vmatpush1.msra.mxu0 %v1883
    %1915 = vmatprep.subr.mxu0 0.0
    %1916 = vmatpush1.msra.mxu0 %v1884
    %1917 = vmatprep.subr.mxu0 0.0
    %1918 = vmatpush1.msra.mxu0 %v1885
    %1919 = vmatprep.subr.mxu0 0.0
    %1920 = vmatpush1.msra.mxu0 %v1886
    %1921 = vmatprep.subr.mxu0 0.0
    %1922 = vmatpush1.msra.mxu0 %v1887
    %1923 = vmatprep.subr.mxu0 0.0
    %1924 = vmatpush1.msra.mxu0 %v1888
    %1925 = vmatprep.subr.mxu0 0.0
    %1926 = vmatpush1.msra.mxu0 %v1889
    %1927 = vmatprep.subr.mxu0 0.0
    %1928 = vmatpush1.msra.mxu0 %v1890
    %1929 = vmatprep.subr.mxu0 0.0
    %1930 = vmatpush1.msra.mxu0 %v1891
    %1931 = vmatprep.subr.mxu0 0.0
    %1932 = vmatpush1.msra.mxu0 0.0
    %1933 = vmatprep.subr.mxu0 0.0
    %1934 = vmatpush1.msra.mxu0 0.0
    %1935 = vmatprep.subr.mxu0 0.0
    %1936 = vmatpush1.msra.mxu0 0.0
    %1937 = vmatprep.subr.mxu0 0.0
    %1938 = vmatpush1.msra.mxu0 0.0
    %1939 = vmatprep.subr.mxu0 0.0
    %1940 = vmatpush1.msra.mxu0 0.0
    %1941 = vmatprep.subr.mxu0 0.0
    %1942 = vmatpush1.msra.mxu0 0.0
    %1943 = vmatprep.subr.mxu0 0.0
    %1944 = vmatpush1.msra.mxu0 0.0
    %1945 = vmatprep.subr.mxu0 0.0
    %1946 = vmatpush1.msra.mxu0 0.0
    %1947 = vmatprep.subr.mxu0 0.0
    %1948 = vmatpush1.msra.mxu0 0.0
    %1949 = vmatprep.subr.mxu0 0.0
    %1950 = vmatpush1.msra.mxu0 0.0
    %1951 = vmatprep.subr.mxu0 0.0
    %1952 = vmatpush1.msra.mxu0 0.0
    %1953 = vmatprep.subr.mxu0 0.0
    %1954 = vmatpush1.msra.mxu0 0.0
    %1955 = vmatprep.subr.mxu0 0.0
    %1956 = vmatpush1.msra.mxu0 0.0
    %1957 = vmatprep.subr.mxu0 0.0
    %1958 = vmatpush1.msra.mxu0 0.0
    %1959 = vmatprep.subr.mxu0 0.0
    %1960 = vmatpush1.msra.mxu0 0.0
    %1961 = vmatprep.subr.mxu0 0.0
    %1962 = vmatpush1.msra.mxu0 0.0
    %1963 = vmatprep.mubr.f32.mxu0 0.0
    %1964 = vmatmul.mubr.f32.gmra.mrb[0].mxu0 %v1868
    %v1965 = vpop.f32.mrb[0].mxu0
    %v1966 = vadd.f32 %v1897, %v1965
    %v1967 = vpop.f32.mrb[0].mxu0
    %1968 = vmatprep.mubr.f32.mxu0 0.0
    %1969 = vmatmul.mubr.f32.gmra.mrb[0].mxu0 %v1869
    %v1970 = vpop.f32.mrb[0].mxu0
    %v1971 = vadd.f32 %v1897, %v1970
    %v1972 = vpop.f32.mrb[0].mxu0
    %1973 = vmatprep.mubr.f32.mxu0 0.0
    %1974 = vmatmul.mubr.f32.gmra.mrb[0].mxu0 %v1870
    %v1975 = vpop.f32.mrb[0].mxu0
    %v1976 = vadd.f32 %v1897, %v1975
    %v1977 = vpop.f32.mrb[0].mxu0
    %1978 = vmatprep.mubr.f32.mxu0 0.0
    %1979 = vmatmul.mubr.f32.gmra.mrb[0].mxu0 %v1871
    %v1980 = vpop.f32.mrb[0].mxu0
    %v1981 = vadd.f32 %v1897, %v1980
    %v1982 = vpop.f32.mrb[0].mxu0
    %1983 = vmatprep.mubr.f32.mxu0 0.0
    %1984 = vmatmul.mubr.f32.gmra.mrb[0].mxu0 %v1872
    %v1985 = vpop.f32.mrb[0].mxu0
    %v1986 = vadd.f32 %v1897, %v1985
    %v1987 = vpop.f32.mrb[0].mxu0
    %1988 = vmatprep.mubr.f32.mxu0 0.0
    %1989 = vmatmul.mubr.f32.gmra.mrb[0].mxu0 %v1873
    %v1990 = vpop.f32.mrb[0].mxu0
    %v1991 = vadd.f32 %v1897, %v1990
    %v1992 = vpop.f32.mrb[0].mxu0
    %1993 = vmatprep.mubr.f32.mxu0 0.0
    %1994 = vmatmul.mubr.f32.gmra.mrb[0].mxu0 %v1874
    %v1995 = vpop.f32.mrb[0].mxu0
    %v1996 = vadd.f32 %v1897, %v1995
    %v1997 = vpop.f32.mrb[0].mxu0
    %1998 = vmatprep.mubr.f32.mxu0 0.0
    %1999 = vmatmul.mubr.f32.gmra.mrb[0].mxu0 %v1875
    %v2000 = vpop.f32.mrb[0].mxu0
    %v2001 = vadd.f32 %v1897, %v2000
    %v2002 = vpop.f32.mrb[0].mxu0
    %2003 = vdwg.mxu0
    %2004 = vst [vmem:[#allocation13] sm:$0xff] %v1966
    %2005 = vst [vmem:[#allocation13 + $0x8] sm:$0xff] %v1971
    %2006 = vst [vmem:[#allocation13 + $0x10] sm:$0xff] %v1976
    %2007 = vst [vmem:[#allocation13 + $0x18] sm:$0xff] %v1981
    %2008 = vst [vmem:[#allocation13 + $0x20] sm:$0xff] %v1986
    %2009 = vst [vmem:[#allocation13 + $0x28] sm:$0xff] %v1991
    %2010 = vst [vmem:[#allocation13 + $0x30] sm:$0xff] %v1996
    %2011 = vst [vmem:[#allocation13 + $0x38] sm:$0xff] %v2001
    // Predicated region
    $region34: #{tpu_custom_call.1} parent=1 // pred_check
      _
    $region35: #{tpu_custom_call.1} parent=1 // pred_check_branch
      %2013 = sbr.rel (0) target = $region37
    $region36: #{tpu_custom_call.1} parent=1 // pred_region
      %s2015 = ssub.s32 1024, 1024
      %2016 = vsyncadd [#allocation12], %s2015
      %s2017 = sshll.u32 [#allocation13], 4
      %s2018 = int_to_ptr.vmem [resolvable:$true] %s2017
      %2023 = dma.vmem_to_hbm [thread:$0]  %s2018, 1024, %s6, [#allocation12], 128, 128, 8
    $region37: #{tpu_custom_call.1} parent=1 // pred_fallthru
      _
    // Predicated region
    $region38: #{tpu_custom_call.1} parent=1 // pred_check
      _
    $region39: #{tpu_custom_call.1} parent=1 // pred_check_branch
      %2025 = sbr.rel (0) target = $region41
    $region40: #{tpu_custom_call.1} parent=1 // pred_region
      %2026 = dma.done [#allocation12], 1024
    $region41: #{tpu_custom_call.1} parent=1 // pred_fallthru
      _
    %2027 = vsyncpa [#allocation11], 1
    %2028 = vsyncpa [#allocation12], 1
  %2029 = vsyncmov [#allocation9]
  %s2030 = vpop.sfrf %2029
  %p2031 = scmp.eq.s32.totalorder %s2030, 0
  %p2032 = pneg %p2031
  %2034 = shalt.err (%p2032)
  %s2035 = scalar_lea.sflag [#allocation9], 1
  %2036 = vsyncmov %s2035
  %s2037 = vpop.sfrf %2036
  %p2038 = scmp.eq.s32.totalorder %s2037, 0
  %p2039 = pneg %p2038
  %2041 = shalt.err (%p2039)
  %s2042 = scalar_lea.sflag [#allocation9], 2
  %2043 = vsyncmov %s2042
  %s2044 = vpop.sfrf %2043
  %p2045 = scmp.eq.s32.totalorder %s2044, 0
  %p2046 = pneg %p2045
  %2048 = shalt.err (%p2046)

</llo_original>
